<compile_context>
chip_gen: v5e
topology: v5e:2x2
jax: 0.10.0
libtpu: 0.0.40
codegen_flags: <defaults>
</compile_context>

<pallas_src>
import functools

import jax
import jax.numpy as jnp
from jax.experimental import pallas as pl
from jax.experimental.pallas import tpu as pltpu

# ----------------------------- model config (small, synthetic) -----------------------------
IMG = 32          # image H = W
C_IN = 3          # input channels
PATCH = 16        # patch size (as in vit_base_patch16)
NUM_PATCH = (IMG // PATCH) ** 2          # 4
N_TOK = NUM_PATCH + 1                    # 5 (cls token + patches)
D = 32            # hidden dim (vit_base uses 768; scaled down)
HEADS = 4
HEAD_DIM = D // HEADS                    # 8
DEPTH = 2         # number of transformer blocks (vit_base uses 12)
MLP = 4 * D       # mlp hidden dim (128 -> lane-dense intermediate)
NUM_FRUIT = 14
NUM_HEALTH = 2
NUM_OUT = NUM_FRUIT + NUM_HEALTH         # 16 (heads fused into one matmul)
LN_EPS = 1e-6     # timm ViT LayerNorm eps
LANES = 128       # lane width used for padded vector packing


def _zero_index_map(*_, ndim):
    return (0,) * ndim


# ----------------------------------- fused Pallas kernel -----------------------------------
def _fused_vit_kernel(patches_ref, patch_w_ref, misc_ref, qkv_w_ref, proj_w_ref,
                      fc1_w_ref, fc2_w_ref, vec_ref, head_w_ref, out_ref,
                      *, batch, n_tok, depth, heads, head_dim, eps):
    """Full ViT forward for the whole (folded) batch in one grid step."""
    f32 = jnp.float32
    d = heads * head_dim                 # hidden dim
    bn = batch * n_tok                   # folded token rows
    mlp = fc1_w_ref.shape[-1]
    scale = float(head_dim) ** -0.5

    def ln(x, g, b):
        mu = jnp.mean(x, axis=-1, keepdims=True)
        var = jnp.mean((x - mu) ** 2, axis=-1, keepdims=True)
        return (x - mu) * jax.lax.rsqrt(var + eps) * g + b

    def gelu(y):
        # TODO(synk): torch nn.GELU default is exact erf-GELU; tanh approximation used
        # here (max abs err ~1e-3) since erf lowering in Mosaic is not guaranteed.
        c = jnp.float32(0.7978845608028654)  # sqrt(2/pi)
        return 0.5 * y * (1.0 + jnp.tanh(c * (y + 0.044715 * y * y * y)))

    # ---- packed constants (single misc ref) ------------------------------------------
    tok_bias  = misc_ref[0:bn, 0:d]                  # cls+pos / patch_b+pos rows  (bn, D)
    norm_g    = misc_ref[bn:bn + 1, 0:d]
    norm_b    = misc_ref[bn + 1:bn + 2, 0:d]
    head_b    = misc_ref[bn + 2:bn + 3, :]           # (1, 128), zero padded past NUM_OUT
    attn_bias = misc_ref[bn + 3:2 * bn + 3, 0:bn]    # 0 same-batch, -1e30 cross-batch

    # ---- patch embedding (batch folded onto rows) -------------------------------------
    patch_tok = jnp.dot(patches_ref[...].astype(f32), patch_w_ref[...],
                        preferred_element_type=f32)                     # (B*NP, D)
    # rows [0, batch) are the cls tokens (value entirely in tok_bias), rest are patches
    tok = jnp.concatenate([jnp.zeros((batch, d), f32), patch_tok], axis=0) + tok_bias

    # ---- transformer blocks (fully unrolled; weights resident in VMEM) ----------------
    for blk in range(depth):
        vec = vec_ref[blk]                                              # (8, 128)
        ln1_g, ln1_b = vec[0:1, 0:d], vec[1:2, 0:d]
        qkv_b        = vec[2:3, 0:3 * d]
        proj_b       = vec[3:4, 0:d]
        ln2_g, ln2_b = vec[4:5, 0:d], vec[5:6, 0:d]
        fc1_b        = vec[6:7, 0:mlp]
        fc2_b        = vec[7:8, 0:d]

        # attention: one qkv matmul for all folded rows; cross-batch scores masked
        h = ln(tok, ln1_g, ln1_b)
        qkv = jnp.dot(h, qkv_w_ref[blk], preferred_element_type=f32) + qkv_b  # (bn, 3D)
        q, k, v = qkv[:, 0:d], qkv[:, d:2 * d], qkv[:, 2 * d:3 * d]
        heads_out = []
        for hh in range(heads):
            lo = hh * head_dim
            qh = q[:, lo:lo + head_dim]
            kh = k[:, lo:lo + head_dim]
            vh = v[:, lo:lo + head_dim]
            s = jax.lax.dot_general(qh, kh, (((1,), (1,)), ((), ())),
                                    preferred_element_type=f32) * scale + attn_bias
            s = s - jnp.max(s, axis=-1, keepdims=True)
            p = jnp.exp(s)
            p = p * pl.reciprocal(jnp.sum(p, axis=-1, keepdims=True), approx=True)
            heads_out.append(jnp.dot(p, vh, preferred_element_type=f32))      # (bn, hd)
        o = jnp.concatenate(heads_out, axis=1)                                # (bn, D)
        tok = tok + jnp.dot(o, proj_w_ref[blk], preferred_element_type=f32) + proj_b

        # MLP branch (pre-norm); 128-wide fc1 intermediate stays in-register
        h = ln(tok, ln2_g, ln2_b)
        h = gelu(jnp.dot(h, fc1_w_ref[blk], preferred_element_type=f32) + fc1_b)
        tok = tok + jnp.dot(h, fc2_w_ref[blk], preferred_element_type=f32) + fc2_b

    # ---- final norm, cls-token pooling, fused lane-dense classifier --------------------
    tok = ln(tok, norm_g, norm_b)
    feats = tok[0:batch, :]                                             # cls rows (B, D)
    logits = jnp.dot(feats, head_w_ref[...], preferred_element_type=f32) + head_b
    out_ref[...] = logits.astype(out_ref.dtype)                         # (B, 128)


# ------------------------------------- forward wrapper -------------------------------------
def multi_task_vit(x, params):
    """x: (B, C, H, W) NCHW float32 -> (out_fruit (B,14), out_health (B,2))"""
    B, C, H, W = x.shape
    Hp, Wp = H // PATCH, W // PATCH
    NP = Hp * Wp
    patch_dim = C * PATCH * PATCH
    n_tok = NP + 1
    bn = B * n_tok
    depth = len(params["blocks"])
    assert MLP <= LANES and 3 * D <= LANES and NUM_OUT <= LANES

    # Patchify in (C, ph, pw) order (Conv2d(C, D, k=16, s=16) semantics); batch folded
    # onto the row axis. Tiny HBM relayout kept in JAX.
    patches = (
        x.reshape(B, C, Hp, PATCH, Wp, PATCH)
        .transpose(0, 2, 4, 1, 3, 5)
        .reshape(B * NP, patch_dim)
    )

    # --- misc packed array: token bias, final LN, head bias, attention mask ------------
    pos = params["pos_embed"].reshape(n_tok, D)
    cls_pos0 = params["cls_token"].reshape(1, D) + pos[0:1]             # (1, D)
    patch_bias = params["patch_b"].reshape(1, D) + pos[1:]              # (NP, D)
    tok_bias = jnp.concatenate([jnp.tile(cls_pos0, (B, 1)),
                                jnp.tile(patch_bias, (B, 1))], axis=0)  # (bn, D)

    head_b = jnp.concatenate([params["fruit_b"], params["health_b"]], axis=0)  # (16,)
    batch_id = jnp.concatenate(
        [jnp.arange(B), jnp.repeat(jnp.arange(B), NP)]).astype(jnp.int32)      # (bn,)
    attn_bias = jnp.where(batch_id[:, None] == batch_id[None, :], 0.0, -1e30)

    misc_rows = ((2 * bn + 3 + 7) // 8) * 8
    misc = jnp.zeros((misc_rows, LANES), jnp.float32)
    misc = misc.at[0:bn, 0:D].set(tok_bias)
    misc = misc.at[bn, 0:D].set(params["norm_g"])
    misc = misc.at[bn + 1, 0:D].set(params["norm_b"])
    misc = misc.at[bn + 2, 0:NUM_OUT].set(head_b)
    misc = misc.at[bn + 3:2 * bn + 3, 0:bn].set(attn_bias)

    # Fused, lane-dense classifier heads: one (D, 128) matmul, sliced afterwards.
    head_w = jnp.concatenate([params["fruit_w"], params["health_w"]], axis=1)  # (D, 16)
    head_w = jnp.pad(head_w, ((0, 0), (0, LANES - NUM_OUT)))                   # (D, 128)

    # --- stacked per-block weights ------------------------------------------------------
    stack = lambda k: jnp.stack([blk[k] for blk in params["blocks"]], axis=0)
    pad_vec = lambda v: jnp.pad(v.reshape(-1), (0, LANES - v.size))
    vec_all = jnp.stack([
        jnp.stack([pad_vec(b["ln1_g"]), pad_vec(b["ln1_b"]), pad_vec(b["qkv_b"]),
                   pad_vec(b["proj_b"]), pad_vec(b["ln2_g"]), pad_vec(b["ln2_b"]),
                   pad_vec(b["fc1_b"]), pad_vec(b["fc2_b"])], axis=0)
        for b in params["blocks"]], axis=0)                             # (DEPTH, 8, 128)

    args = [patches, params["patch_w"], misc, stack("qkv_w"), stack("proj_w"),
            stack("fc1_w"), stack("fc2_w"), vec_all, head_w]
    in_specs = [pl.BlockSpec(a.shape, functools.partial(_zero_index_map, ndim=a.ndim))
                for a in args]

    kernel = functools.partial(_fused_vit_kernel, batch=B, n_tok=n_tok, depth=depth,
                               heads=HEADS, head_dim=HEAD_DIM, eps=LN_EPS)
    out = pl.pallas_call(
        kernel,
        out_shape=jax.ShapeDtypeStruct((B, LANES), x.dtype),
        grid=(1,),
        in_specs=in_specs,
        out_specs=pl.BlockSpec((B, LANES), functools.partial(_zero_index_map, ndim=2)),
        compiler_params=pltpu.CompilerParams(
            dimension_semantics=("arbitrary",),
            vmem_limit_bytes=8 * 1024 * 1024,   # hygiene; resident footprint < 1 MiB
        ),
    )(*args)

    logits = out[:, :NUM_OUT]
    return logits[:, :NUM_FRUIT], logits[:, NUM_FRUIT:]


# --------------------------------- pure-JAX reference ---------------------------------
def reference_forward(x, params):
    B, C, H, W = x.shape
    Hp, Wp = H // PATCH, W // PATCH
    hi = jax.lax.Precision.HIGHEST
    dot = lambda a, b: jnp.dot(a, b, precision=hi)

    patches = (x.reshape(B, C, Hp, PATCH, Wp, PATCH)
               .transpose(0, 2, 4, 1, 3, 5)
               .reshape(B, Hp * Wp, C * PATCH * PATCH))
    tok = dot(patches, params["patch_w"]) + params["patch_b"]
    cls = jnp.broadcast_to(params["cls_token"], (B, 1, D))
    tok = jnp.concatenate([cls, tok], axis=1) + params["pos_embed"]

    def ln(v, g, b):
        mu = jnp.mean(v, -1, keepdims=True)
        var = jnp.mean((v - mu) ** 2, -1, keepdims=True)
        return (v - mu) * jax.lax.rsqrt(var + LN_EPS) * g + b

    def gelu(v):
        c = 0.7978845608028654
        return 0.5 * v * (1.0 + jnp.tanh(c * (v + 0.044715 * v ** 3)))

    for p in params["blocks"]:
        h = ln(tok, p["ln1_g"], p["ln1_b"])
        qkv = dot(h, p["qkv_w"]) + p["qkv_b"]
        qkv = qkv.reshape(B, N_TOK, 3, HEADS, HEAD_DIM).transpose(2, 0, 3, 1, 4)
        q, k, v = qkv[0], qkv[1], qkv[2]
        s = jnp.einsum("bhqd,bhkd->bhqk", q, k, precision=hi) * (HEAD_DIM ** -0.5)
        a = jax.nn.softmax(s, axis=-1)
        o = jnp.einsum("bhqk,bhkd->bhqd", a, v, precision=hi)
        o = o.transpose(0, 2, 1, 3).reshape(B, N_TOK, D)
        tok = tok + dot(o, p["proj_w"]) + p["proj_b"]
        h = ln(tok, p["ln2_g"], p["ln2_b"])
        h = gelu(dot(h, p["fc1_w"]) + p["fc1_b"])
        tok = tok + dot(h, p["fc2_w"]) + p["fc2_b"]

    tok = ln(tok, params["norm_g"], params["norm_b"])
    feats = tok[:, 0]
    return (dot(feats, params["fruit_w"]) + params["fruit_b"],
            dot(feats, params["health_w"]) + params["health_b"])


# ------------------------------------ parameter init ------------------------------------
def init_params(key):
    def nrm(k, shape, scale=0.02):
        return (scale * jax.random.normal(k, shape)).astype(jnp.float32)

    keys = iter(jax.random.split(key, 64))
    params = {
        "patch_w": nrm(next(keys), (C_IN * PATCH * PATCH, D)),
        "patch_b": jnp.zeros((D,), jnp.float32),
        "cls_token": nrm(next(keys), (1, 1, D)),
        "pos_embed": nrm(next(keys), (1, N_TOK, D)),
        "norm_g": jnp.ones((D,), jnp.float32),
        "norm_b": jnp.zeros((D,), jnp.float32),
        "fruit_w": nrm(next(keys), (D, NUM_FRUIT)),
        "fruit_b": jnp.zeros((NUM_FRUIT,), jnp.float32),
        "health_w": nrm(next(keys), (D, NUM_HEALTH)),
        "health_b": jnp.zeros((NUM_HEALTH,), jnp.float32),
        "blocks": [],
    }
    for _ in range(DEPTH):
        params["blocks"].append(
            {
                "ln1_g": jnp.ones((D,), jnp.float32),
                "ln1_b": jnp.zeros((D,), jnp.float32),
                "qkv_w": nrm(next(keys), (D, 3 * D)),
                "qkv_b": jnp.zeros((3 * D,), jnp.float32),
                "proj_w": nrm(next(keys), (D, D)),
                "proj_b": jnp.zeros((D,), jnp.float32),
                "ln2_g": jnp.ones((D,), jnp.float32),
                "ln2_b": jnp.zeros((D,), jnp.float32),
                "fc1_w": nrm(next(keys), (D, MLP)),
                "fc1_b": jnp.zeros((MLP,), jnp.float32),
                "fc2_w": nrm(next(keys), (MLP, D)),
                "fc2_b": jnp.zeros((D,), jnp.float32),
            }
        )
    return params


# ----------------------------------------- main -----------------------------------------
if __name__ == "__main__":
    x = jax.random.normal(jax.random.PRNGKey(0), (2, C_IN, IMG, IMG), dtype=jnp.float32)
    params = init_params(jax.random.PRNGKey(1))

    fwd = jax.jit(lambda inp: multi_task_vit(inp, params))
    out_fruit, out_health = fwd(x)
    jax.block_until_ready((out_fruit, out_health))

    assert out_fruit.shape == (2, NUM_FRUIT), out_fruit.shape
    assert out_health.shape == (2, NUM_HEALTH), out_health.shape
    assert bool(jnp.all(jnp.isfinite(out_fruit))) and bool(jnp.all(jnp.isfinite(out_health)))

    # numerical check against a pure-JAX reference (same tanh-GELU approximation)
    ref_fruit, ref_health = jax.jit(lambda inp: reference_forward(inp, params))(x)
    assert bool(jnp.allclose(out_fruit, ref_fruit, atol=1e-2, rtol=1e-2)), (
        float(jnp.max(jnp.abs(out_fruit - ref_fruit))))
    assert bool(jnp.allclose(out_health, ref_health, atol=1e-2, rtol=1e-2)), (
        float(jnp.max(jnp.abs(out_health - ref_health))))

    print("KERNEL_OK")
</pallas_src>

<mosaic_0001>
module attributes {stable_mosaic.version = 11 : i64} {
  func.func @_fused_vit_kernel(%arg0: i32, %arg1: memref<8x768xf32, #tpu.memory_space<vmem>>, %arg2: memref<768x32xf32, #tpu.memory_space<vmem>>, %arg3: memref<24x128xf32, #tpu.memory_space<vmem>>, %arg4: memref<2x32x96xf32, #tpu.memory_space<vmem>>, %arg5: memref<2x32x32xf32, #tpu.memory_space<vmem>>, %arg6: memref<2x32x128xf32, #tpu.memory_space<vmem>>, %arg7: memref<2x128x32xf32, #tpu.memory_space<vmem>>, %arg8: memref<2x8x128xf32, #tpu.memory_space<vmem>>, %arg9: memref<32x128xf32, #tpu.memory_space<vmem>>, %arg10: memref<2x128xf32, #tpu.memory_space<vmem>>) attributes {dimension_semantics = [#tpu.dimension_semantics<arbitrary>], iteration_bounds = array<i64: 1>, scalar_prefetch = 0 : i64, scratch_operands = 0 : i64, tpu.core_type = #tpu.core_type<tc>, window_params = [{pipeline_mode = #tpu.pipeline_mode<synchronous>, transform_indices = @transform_0, window_bounds = array<i64: 8, 768>}, {pipeline_mode = #tpu.pipeline_mode<synchronous>, transform_indices = @transform_1, window_bounds = array<i64: 768, 32>}, {pipeline_mode = #tpu.pipeline_mode<synchronous>, transform_indices = @transform_2, window_bounds = array<i64: 24, 128>}, {pipeline_mode = #tpu.pipeline_mode<synchronous>, transform_indices = @transform_3, window_bounds = array<i64: 2, 32, 96>}, {pipeline_mode = #tpu.pipeline_mode<synchronous>, transform_indices = @transform_4, window_bounds = array<i64: 2, 32, 32>}, {pipeline_mode = #tpu.pipeline_mode<synchronous>, transform_indices = @transform_5, window_bounds = array<i64: 2, 32, 128>}, {pipeline_mode = #tpu.pipeline_mode<synchronous>, transform_indices = @transform_6, window_bounds = array<i64: 2, 128, 32>}, {pipeline_mode = #tpu.pipeline_mode<synchronous>, transform_indices = @transform_7, window_bounds = array<i64: 2, 8, 128>}, {pipeline_mode = #tpu.pipeline_mode<synchronous>, transform_indices = @transform_8, window_bounds = array<i64: 32, 128>}, {pipeline_mode = #tpu.pipeline_mode<synchronous>, transform_indices = @transform_9, window_bounds = array<i64: 2, 128>}]} {
    %c0 = arith.constant 0 : index
    %c0_0 = arith.constant 0 : index
    %0 = vector.load %arg3[%c0, %c0_0] : memref<24x128xf32, #tpu.memory_space<vmem>>, vector<10x32xf32>
    %c10 = arith.constant 10 : index
    %c0_1 = arith.constant 0 : index
    %1 = vector.load %arg3[%c10, %c0_1] : memref<24x128xf32, #tpu.memory_space<vmem>>, vector<1x32xf32>
    %c11 = arith.constant 11 : index
    %c0_2 = arith.constant 0 : index
    %2 = vector.load %arg3[%c11, %c0_2] : memref<24x128xf32, #tpu.memory_space<vmem>>, vector<1x32xf32>
    %c12 = arith.constant 12 : index
    %c0_3 = arith.constant 0 : index
    %3 = vector.load %arg3[%c12, %c0_3] : memref<24x128xf32, #tpu.memory_space<vmem>>, vector<1x128xf32>
    %c13 = arith.constant 13 : index
    %c0_4 = arith.constant 0 : index
    %4 = vector.load %arg3[%c13, %c0_4] : memref<24x128xf32, #tpu.memory_space<vmem>>, vector<10x10xf32>
    %c0_5 = arith.constant 0 : index
    %c0_6 = arith.constant 0 : index
    %5 = vector.load %arg1[%c0_5, %c0_6] : memref<8x768xf32, #tpu.memory_space<vmem>>, vector<8x768xf32>
    %c0_7 = arith.constant 0 : index
    %c0_8 = arith.constant 0 : index
    %6 = vector.load %arg2[%c0_7, %c0_8] : memref<768x32xf32, #tpu.memory_space<vmem>>, vector<768x32xf32>
    %cst = arith.constant dense<0.000000e+00> : vector<8x32xf32>
    %7 = tpu.matmul %5, %6, %cst {dimension_numbers = #tpu.dot_dimension_numbers<[1], [0], [0], [1], [0, 0, 1, 1], [], []>} : vector<8x768xf32>, vector<768x32xf32>, vector<8x32xf32> -> vector<8x32xf32>
    %cst_9 = arith.constant 0.000000e+00 : f32
    %8 = vector.broadcast %cst_9 : f32 to vector<2x32xf32>
    %9 = tpu.concatenate %8, %7 in 0 : vector<2x32xf32>, vector<8x32xf32> -> vector<10x32xf32>
    %10 = arith.addf %9, %0 : vector<10x32xf32>
    %c0_10 = arith.constant 0 : index
    %c0_11 = arith.constant 0 : index
    %c0_12 = arith.constant 0 : index
    %11 = vector.load %arg8[%c0_10, %c0_11, %c0_12] : memref<2x8x128xf32, #tpu.memory_space<vmem>>, vector<1x8x128xf32>
    %12 = vector.shape_cast %11 : vector<1x8x128xf32> to vector<8x128xf32>
    %13 = vector.extract_strided_slice %12 {offsets = [0, 0], sizes = [1, 32], strides = [1, 1]} : vector<8x128xf32> to vector<1x32xf32>
    %14 = vector.extract_strided_slice %12 {offsets = [1, 0], sizes = [1, 32], strides = [1, 1]} : vector<8x128xf32> to vector<1x32xf32>
    %15 = vector.extract_strided_slice %12 {offsets = [2, 0], sizes = [1, 96], strides = [1, 1]} : vector<8x128xf32> to vector<1x96xf32>
    %16 = vector.extract_strided_slice %12 {offsets = [3, 0], sizes = [1, 32], strides = [1, 1]} : vector<8x128xf32> to vector<1x32xf32>
    %17 = vector.extract_strided_slice %12 {offsets = [4, 0], sizes = [1, 32], strides = [1, 1]} : vector<8x128xf32> to vector<1x32xf32>
    %18 = vector.extract_strided_slice %12 {offsets = [5, 0], sizes = [1, 32], strides = [1, 1]} : vector<8x128xf32> to vector<1x32xf32>
    %19 = vector.extract_strided_slice %12 {offsets = [6, 0], sizes = [1, 128], strides = [1, 1]} : vector<8x128xf32> to vector<1x128xf32>
    %20 = vector.extract_strided_slice %12 {offsets = [7, 0], sizes = [1, 32], strides = [1, 1]} : vector<8x128xf32> to vector<1x32xf32>
    %cst_13 = arith.constant dense<0.000000e+00> : vector<10xf32>
    %21 = vector.multi_reduction <add>, %10, %cst_13 [1] : vector<10x32xf32> to vector<10xf32>
    %22 = vector.shape_cast %21 : vector<10xf32> to vector<10x1xf32>
    %cst_14 = arith.constant 3.200000e+01 : f32
    %23 = vector.broadcast %cst_14 : f32 to vector<10x1xf32>
    %24 = arith.divf %22, %23 : vector<10x1xf32>
    %25 = vector.broadcast %24 : vector<10x1xf32> to vector<10x32xf32>
    %26 = arith.subf %10, %25 : vector<10x32xf32>
    %27 = arith.mulf %26, %26 : vector<10x32xf32>
    %cst_15 = arith.constant dense<0.000000e+00> : vector<10xf32>
    %28 = vector.multi_reduction <add>, %27, %cst_15 [1] : vector<10x32xf32> to vector<10xf32>
    %29 = vector.shape_cast %28 : vector<10xf32> to vector<10x1xf32>
    %cst_16 = arith.constant 3.200000e+01 : f32
    %30 = vector.broadcast %cst_16 : f32 to vector<10x1xf32>
    %31 = arith.divf %29, %30 : vector<10x1xf32>
    %32 = vector.broadcast %24 : vector<10x1xf32> to vector<10x32xf32>
    %33 = arith.subf %10, %32 : vector<10x32xf32>
    %cst_17 = arith.constant 9.99999997E-7 : f32
    %34 = vector.broadcast %cst_17 : f32 to vector<10x1xf32>
    %35 = arith.addf %31, %34 : vector<10x1xf32>
    %36 = math.rsqrt %35 : vector<10x1xf32>
    %37 = vector.broadcast %36 : vector<10x1xf32> to vector<10x32xf32>
    %38 = arith.mulf %33, %37 : vector<10x32xf32>
    %39 = vector.broadcast %13 : vector<1x32xf32> to vector<10x32xf32>
    %40 = arith.mulf %38, %39 : vector<10x32xf32>
    %41 = vector.broadcast %14 : vector<1x32xf32> to vector<10x32xf32>
    %42 = arith.addf %40, %41 : vector<10x32xf32>
    %c0_18 = arith.constant 0 : index
    %c0_19 = arith.constant 0 : index
    %c0_20 = arith.constant 0 : index
    %43 = vector.load %arg4[%c0_18, %c0_19, %c0_20] : memref<2x32x96xf32, #tpu.memory_space<vmem>>, vector<1x32x96xf32>
    %44 = vector.shape_cast %43 : vector<1x32x96xf32> to vector<32x96xf32>
    %cst_21 = arith.constant dense<0.000000e+00> : vector<10x96xf32>
    %45 = tpu.matmul %42, %44, %cst_21 {dimension_numbers = #tpu.dot_dimension_numbers<[1], [0], [0], [1], [0, 0, 1, 1], [], []>} : vector<10x32xf32>, vector<32x96xf32>, vector<10x96xf32> -> vector<10x96xf32>
    %46 = vector.broadcast %15 : vector<1x96xf32> to vector<10x96xf32>
    %47 = arith.addf %45, %46 : vector<10x96xf32>
    %48 = vector.extract_strided_slice %47 {offsets = [0, 0], sizes = [10, 32], strides = [1, 1]} : vector<10x96xf32> to vector<10x32xf32>
    %49 = vector.extract_strided_slice %47 {offsets = [0, 32], sizes = [10, 32], strides = [1, 1]} : vector<10x96xf32> to vector<10x32xf32>
    %50 = vector.extract_strided_slice %47 {offsets = [0, 64], sizes = [10, 32], strides = [1, 1]} : vector<10x96xf32> to vector<10x32xf32>
    %51 = vector.extract_strided_slice %48 {offsets = [0, 0], sizes = [10, 8], strides = [1, 1]} : vector<10x32xf32> to vector<10x8xf32>
    %52 = vector.extract_strided_slice %49 {offsets = [0, 0], sizes = [10, 8], strides = [1, 1]} : vector<10x32xf32> to vector<10x8xf32>
    %53 = vector.extract_strided_slice %50 {offsets = [0, 0], sizes = [10, 8], strides = [1, 1]} : vector<10x32xf32> to vector<10x8xf32>
    %cst_22 = arith.constant dense<0.000000e+00> : vector<10x10xf32>
    %54 = tpu.matmul %51, %52, %cst_22 {dimension_numbers = #tpu.dot_dimension_numbers<[1], [1], [0], [0], [0, 0, 1, 0], [], []>} : vector<10x8xf32>, vector<10x8xf32>, vector<10x10xf32> -> vector<10x10xf32>
    %cst_23 = arith.constant 0.353553385 : f32
    %55 = vector.broadcast %cst_23 : f32 to vector<10x10xf32>
    %56 = arith.mulf %54, %55 : vector<10x10xf32>
    %57 = arith.addf %56, %4 : vector<10x10xf32>
    %cst_24 = arith.constant dense<0xFF800000> : vector<10xf32>
    %58 = vector.multi_reduction <maximumf>, %57, %cst_24 [1] : vector<10x10xf32> to vector<10xf32>
    %59 = vector.shape_cast %58 : vector<10xf32> to vector<10x1xf32>
    %60 = vector.broadcast %59 : vector<10x1xf32> to vector<10x10xf32>
    %61 = arith.subf %57, %60 : vector<10x10xf32>
    %62 = math.exp %61 : vector<10x10xf32>
    %cst_25 = arith.constant dense<0.000000e+00> : vector<10xf32>
    %63 = vector.multi_reduction <add>, %62, %cst_25 [1] : vector<10x10xf32> to vector<10xf32>
    %64 = vector.shape_cast %63 : vector<10xf32> to vector<10x1xf32>
    %65 = tpu.reciprocal %64 {approx = true} : vector<10x1xf32> -> vector<10x1xf32>
    %66 = vector.broadcast %65 : vector<10x1xf32> to vector<10x10xf32>
    %67 = arith.mulf %62, %66 : vector<10x10xf32>
    %cst_26 = arith.constant dense<0.000000e+00> : vector<10x8xf32>
    %68 = tpu.matmul %67, %53, %cst_26 {dimension_numbers = #tpu.dot_dimension_numbers<[1], [0], [0], [1], [0, 0, 1, 1], [], []>} : vector<10x10xf32>, vector<10x8xf32>, vector<10x8xf32> -> vector<10x8xf32>
    %69 = vector.extract_strided_slice %48 {offsets = [0, 8], sizes = [10, 8], strides = [1, 1]} : vector<10x32xf32> to vector<10x8xf32>
    %70 = vector.extract_strided_slice %49 {offsets = [0, 8], sizes = [10, 8], strides = [1, 1]} : vector<10x32xf32> to vector<10x8xf32>
    %71 = vector.extract_strided_slice %50 {offsets = [0, 8], sizes = [10, 8], strides = [1, 1]} : vector<10x32xf32> to vector<10x8xf32>
    %cst_27 = arith.constant dense<0.000000e+00> : vector<10x10xf32>
    %72 = tpu.matmul %69, %70, %cst_27 {dimension_numbers = #tpu.dot_dimension_numbers<[1], [1], [0], [0], [0, 0, 1, 0], [], []>} : vector<10x8xf32>, vector<10x8xf32>, vector<10x10xf32> -> vector<10x10xf32>
    %cst_28 = arith.constant 0.353553385 : f32
    %73 = vector.broadcast %cst_28 : f32 to vector<10x10xf32>
    %74 = arith.mulf %72, %73 : vector<10x10xf32>
    %75 = arith.addf %74, %4 : vector<10x10xf32>
    %cst_29 = arith.constant dense<0xFF800000> : vector<10xf32>
    %76 = vector.multi_reduction <maximumf>, %75, %cst_29 [1] : vector<10x10xf32> to vector<10xf32>
    %77 = vector.shape_cast %76 : vector<10xf32> to vector<10x1xf32>
    %78 = vector.broadcast %77 : vector<10x1xf32> to vector<10x10xf32>
    %79 = arith.subf %75, %78 : vector<10x10xf32>
    %80 = math.exp %79 : vector<10x10xf32>
    %cst_30 = arith.constant dense<0.000000e+00> : vector<10xf32>
    %81 = vector.multi_reduction <add>, %80, %cst_30 [1] : vector<10x10xf32> to vector<10xf32>
    %82 = vector.shape_cast %81 : vector<10xf32> to vector<10x1xf32>
    %83 = tpu.reciprocal %82 {approx = true} : vector<10x1xf32> -> vector<10x1xf32>
    %84 = vector.broadcast %83 : vector<10x1xf32> to vector<10x10xf32>
    %85 = arith.mulf %80, %84 : vector<10x10xf32>
    %cst_31 = arith.constant dense<0.000000e+00> : vector<10x8xf32>
    %86 = tpu.matmul %85, %71, %cst_31 {dimension_numbers = #tpu.dot_dimension_numbers<[1], [0], [0], [1], [0, 0, 1, 1], [], []>} : vector<10x10xf32>, vector<10x8xf32>, vector<10x8xf32> -> vector<10x8xf32>
    %87 = vector.extract_strided_slice %48 {offsets = [0, 16], sizes = [10, 8], strides = [1, 1]} : vector<10x32xf32> to vector<10x8xf32>
    %88 = vector.extract_strided_slice %49 {offsets = [0, 16], sizes = [10, 8], strides = [1, 1]} : vector<10x32xf32> to vector<10x8xf32>
    %89 = vector.extract_strided_slice %50 {offsets = [0, 16], sizes = [10, 8], strides = [1, 1]} : vector<10x32xf32> to vector<10x8xf32>
    %cst_32 = arith.constant dense<0.000000e+00> : vector<10x10xf32>
    %90 = tpu.matmul %87, %88, %cst_32 {dimension_numbers = #tpu.dot_dimension_numbers<[1], [1], [0], [0], [0, 0, 1, 0], [], []>} : vector<10x8xf32>, vector<10x8xf32>, vector<10x10xf32> -> vector<10x10xf32>
    %cst_33 = arith.constant 0.353553385 : f32
    %91 = vector.broadcast %cst_33 : f32 to vector<10x10xf32>
    %92 = arith.mulf %90, %91 : vector<10x10xf32>
    %93 = arith.addf %92, %4 : vector<10x10xf32>
    %cst_34 = arith.constant dense<0xFF800000> : vector<10xf32>
    %94 = vector.multi_reduction <maximumf>, %93, %cst_34 [1] : vector<10x10xf32> to vector<10xf32>
    %95 = vector.shape_cast %94 : vector<10xf32> to vector<10x1xf32>
    %96 = vector.broadcast %95 : vector<10x1xf32> to vector<10x10xf32>
    %97 = arith.subf %93, %96 : vector<10x10xf32>
    %98 = math.exp %97 : vector<10x10xf32>
    %cst_35 = arith.constant dense<0.000000e+00> : vector<10xf32>
    %99 = vector.multi_reduction <add>, %98, %cst_35 [1] : vector<10x10xf32> to vector<10xf32>
    %100 = vector.shape_cast %99 : vector<10xf32> to vector<10x1xf32>
    %101 = tpu.reciprocal %100 {approx = true} : vector<10x1xf32> -> vector<10x1xf32>
    %102 = vector.broadcast %101 : vector<10x1xf32> to vector<10x10xf32>
    %103 = arith.mulf %98, %102 : vector<10x10xf32>
    %cst_36 = arith.constant dense<0.000000e+00> : vector<10x8xf32>
    %104 = tpu.matmul %103, %89, %cst_36 {dimension_numbers = #tpu.dot_dimension_numbers<[1], [0], [0], [1], [0, 0, 1, 1], [], []>} : vector<10x10xf32>, vector<10x8xf32>, vector<10x8xf32> -> vector<10x8xf32>
    %105 = vector.extract_strided_slice %48 {offsets = [0, 24], sizes = [10, 8], strides = [1, 1]} : vector<10x32xf32> to vector<10x8xf32>
    %106 = vector.extract_strided_slice %49 {offsets = [0, 24], sizes = [10, 8], strides = [1, 1]} : vector<10x32xf32> to vector<10x8xf32>
    %107 = vector.extract_strided_slice %50 {offsets = [0, 24], sizes = [10, 8], strides = [1, 1]} : vector<10x32xf32> to vector<10x8xf32>
    %cst_37 = arith.constant dense<0.000000e+00> : vector<10x10xf32>
    %108 = tpu.matmul %105, %106, %cst_37 {dimension_numbers = #tpu.dot_dimension_numbers<[1], [1], [0], [0], [0, 0, 1, 0], [], []>} : vector<10x8xf32>, vector<10x8xf32>, vector<10x10xf32> -> vector<10x10xf32>
    %cst_38 = arith.constant 0.353553385 : f32
    %109 = vector.broadcast %cst_38 : f32 to vector<10x10xf32>
    %110 = arith.mulf %108, %109 : vector<10x10xf32>
    %111 = arith.addf %110, %4 : vector<10x10xf32>
    %cst_39 = arith.constant dense<0xFF800000> : vector<10xf32>
    %112 = vector.multi_reduction <maximumf>, %111, %cst_39 [1] : vector<10x10xf32> to vector<10xf32>
    %113 = vector.shape_cast %112 : vector<10xf32> to vector<10x1xf32>
    %114 = vector.broadcast %113 : vector<10x1xf32> to vector<10x10xf32>
    %115 = arith.subf %111, %114 : vector<10x10xf32>
    %116 = math.exp %115 : vector<10x10xf32>
    %cst_40 = arith.constant dense<0.000000e+00> : vector<10xf32>
    %117 = vector.multi_reduction <add>, %116, %cst_40 [1] : vector<10x10xf32> to vector<10xf32>
    %118 = vector.shape_cast %117 : vector<10xf32> to vector<10x1xf32>
    %119 = tpu.reciprocal %118 {approx = true} : vector<10x1xf32> -> vector<10x1xf32>
    %120 = vector.broadcast %119 : vector<10x1xf32> to vector<10x10xf32>
    %121 = arith.mulf %116, %120 : vector<10x10xf32>
    %cst_41 = arith.constant dense<0.000000e+00> : vector<10x8xf32>
    %122 = tpu.matmul %121, %107, %cst_41 {dimension_numbers = #tpu.dot_dimension_numbers<[1], [0], [0], [1], [0, 0, 1, 1], [], []>} : vector<10x10xf32>, vector<10x8xf32>, vector<10x8xf32> -> vector<10x8xf32>
    %123 = tpu.concatenate %68, %86, %104, %122 in 1 : vector<10x8xf32>, vector<10x8xf32>, vector<10x8xf32>, vector<10x8xf32> -> vector<10x32xf32>
    %c0_42 = arith.constant 0 : index
    %c0_43 = arith.constant 0 : index
    %c0_44 = arith.constant 0 : index
    %124 = vector.load %arg5[%c0_42, %c0_43, %c0_44] : memref<2x32x32xf32, #tpu.memory_space<vmem>>, vector<1x32x32xf32>
    %125 = vector.shape_cast %124 : vector<1x32x32xf32> to vector<32x32xf32>
    %cst_45 = arith.constant dense<0.000000e+00> : vector<10x32xf32>
    %126 = tpu.matmul %123, %125, %cst_45 {dimension_numbers = #tpu.dot_dimension_numbers<[1], [0], [0], [1], [0, 0, 1, 1], [], []>} : vector<10x32xf32>, vector<32x32xf32>, vector<10x32xf32> -> vector<10x32xf32>
    %127 = arith.addf %10, %126 : vector<10x32xf32>
    %128 = vector.broadcast %16 : vector<1x32xf32> to vector<10x32xf32>
    %129 = arith.addf %127, %128 : vector<10x32xf32>
    %cst_46 = arith.constant dense<0.000000e+00> : vector<10xf32>
    %130 = vector.multi_reduction <add>, %129, %cst_46 [1] : vector<10x32xf32> to vector<10xf32>
    %131 = vector.shape_cast %130 : vector<10xf32> to vector<10x1xf32>
    %cst_47 = arith.constant 3.200000e+01 : f32
    %132 = vector.broadcast %cst_47 : f32 to vector<10x1xf32>
    %133 = arith.divf %131, %132 : vector<10x1xf32>
    %134 = vector.broadcast %133 : vector<10x1xf32> to vector<10x32xf32>
    %135 = arith.subf %129, %134 : vector<10x32xf32>
    %136 = arith.mulf %135, %135 : vector<10x32xf32>
    %cst_48 = arith.constant dense<0.000000e+00> : vector<10xf32>
    %137 = vector.multi_reduction <add>, %136, %cst_48 [1] : vector<10x32xf32> to vector<10xf32>
    %138 = vector.shape_cast %137 : vector<10xf32> to vector<10x1xf32>
    %cst_49 = arith.constant 3.200000e+01 : f32
    %139 = vector.broadcast %cst_49 : f32 to vector<10x1xf32>
    %140 = arith.divf %138, %139 : vector<10x1xf32>
    %141 = vector.broadcast %133 : vector<10x1xf32> to vector<10x32xf32>
    %142 = arith.subf %129, %141 : vector<10x32xf32>
    %cst_50 = arith.constant 9.99999997E-7 : f32
    %143 = vector.broadcast %cst_50 : f32 to vector<10x1xf32>
    %144 = arith.addf %140, %143 : vector<10x1xf32>
    %145 = math.rsqrt %144 : vector<10x1xf32>
    %146 = vector.broadcast %145 : vector<10x1xf32> to vector<10x32xf32>
    %147 = arith.mulf %142, %146 : vector<10x32xf32>
    %148 = vector.broadcast %17 : vector<1x32xf32> to vector<10x32xf32>
    %149 = arith.mulf %147, %148 : vector<10x32xf32>
    %150 = vector.broadcast %18 : vector<1x32xf32> to vector<10x32xf32>
    %151 = arith.addf %149, %150 : vector<10x32xf32>
    %c0_51 = arith.constant 0 : index
    %c0_52 = arith.constant 0 : index
    %c0_53 = arith.constant 0 : index
    %152 = vector.load %arg6[%c0_51, %c0_52, %c0_53] : memref<2x32x128xf32, #tpu.memory_space<vmem>>, vector<1x32x128xf32>
    %153 = vector.shape_cast %152 : vector<1x32x128xf32> to vector<32x128xf32>
    %cst_54 = arith.constant dense<0.000000e+00> : vector<10x128xf32>
    %154 = tpu.matmul %151, %153, %cst_54 {dimension_numbers = #tpu.dot_dimension_numbers<[1], [0], [0], [1], [0, 0, 1, 1], [], []>} : vector<10x32xf32>, vector<32x128xf32>, vector<10x128xf32> -> vector<10x128xf32>
    %155 = vector.broadcast %19 : vector<1x128xf32> to vector<10x128xf32>
    %156 = arith.addf %154, %155 : vector<10x128xf32>
    %cst_55 = arith.constant 5.000000e-01 : f32
    %157 = vector.broadcast %cst_55 : f32 to vector<10x128xf32>
    %158 = arith.mulf %157, %156 : vector<10x128xf32>
    %cst_56 = arith.constant 4.471500e-02 : f32
    %159 = vector.broadcast %cst_56 : f32 to vector<10x128xf32>
    %160 = arith.mulf %159, %156 : vector<10x128xf32>
    %161 = arith.mulf %160, %156 : vector<10x128xf32>
    %162 = arith.mulf %161, %156 : vector<10x128xf32>
    %163 = arith.addf %156, %162 : vector<10x128xf32>
    %cst_57 = arith.constant 0.797884583 : f32
    %164 = vector.broadcast %cst_57 : f32 to vector<10x128xf32>
    %165 = arith.mulf %164, %163 : vector<10x128xf32>
    %166 = math.tanh %165 : vector<10x128xf32>
    %cst_58 = arith.constant 1.000000e+00 : f32
    %167 = vector.broadcast %cst_58 : f32 to vector<10x128xf32>
    %168 = arith.addf %167, %166 : vector<10x128xf32>
    %169 = arith.mulf %158, %168 : vector<10x128xf32>
    %c0_59 = arith.constant 0 : index
    %c0_60 = arith.constant 0 : index
    %c0_61 = arith.constant 0 : index
    %170 = vector.load %arg7[%c0_59, %c0_60, %c0_61] : memref<2x128x32xf32, #tpu.memory_space<vmem>>, vector<1x128x32xf32>
    %171 = vector.shape_cast %170 : vector<1x128x32xf32> to vector<128x32xf32>
    %cst_62 = arith.constant dense<0.000000e+00> : vector<10x32xf32>
    %172 = tpu.matmul %169, %171, %cst_62 {dimension_numbers = #tpu.dot_dimension_numbers<[1], [0], [0], [1], [0, 0, 1, 1], [], []>} : vector<10x128xf32>, vector<128x32xf32>, vector<10x32xf32> -> vector<10x32xf32>
    %173 = arith.addf %129, %172 : vector<10x32xf32>
    %174 = vector.broadcast %20 : vector<1x32xf32> to vector<10x32xf32>
    %175 = arith.addf %173, %174 : vector<10x32xf32>
    %c1 = arith.constant 1 : index
    %c0_63 = arith.constant 0 : index
    %c0_64 = arith.constant 0 : index
    %176 = vector.load %arg8[%c1, %c0_63, %c0_64] : memref<2x8x128xf32, #tpu.memory_space<vmem>>, vector<1x8x128xf32>
    %177 = vector.shape_cast %176 : vector<1x8x128xf32> to vector<8x128xf32>
    %178 = vector.extract_strided_slice %177 {offsets = [0, 0], sizes = [1, 32], strides = [1, 1]} : vector<8x128xf32> to vector<1x32xf32>
    %179 = vector.extract_strided_slice %177 {offsets = [1, 0], sizes = [1, 32], strides = [1, 1]} : vector<8x128xf32> to vector<1x32xf32>
    %180 = vector.extract_strided_slice %177 {offsets = [2, 0], sizes = [1, 96], strides = [1, 1]} : vector<8x128xf32> to vector<1x96xf32>
    %181 = vector.extract_strided_slice %177 {offsets = [3, 0], sizes = [1, 32], strides = [1, 1]} : vector<8x128xf32> to vector<1x32xf32>
    %182 = vector.extract_strided_slice %177 {offsets = [4, 0], sizes = [1, 32], strides = [1, 1]} : vector<8x128xf32> to vector<1x32xf32>
    %183 = vector.extract_strided_slice %177 {offsets = [5, 0], sizes = [1, 32], strides = [1, 1]} : vector<8x128xf32> to vector<1x32xf32>
    %184 = vector.extract_strided_slice %177 {offsets = [6, 0], sizes = [1, 128], strides = [1, 1]} : vector<8x128xf32> to vector<1x128xf32>
    %185 = vector.extract_strided_slice %177 {offsets = [7, 0], sizes = [1, 32], strides = [1, 1]} : vector<8x128xf32> to vector<1x32xf32>
    %cst_65 = arith.constant dense<0.000000e+00> : vector<10xf32>
    %186 = vector.multi_reduction <add>, %175, %cst_65 [1] : vector<10x32xf32> to vector<10xf32>
    %187 = vector.shape_cast %186 : vector<10xf32> to vector<10x1xf32>
    %cst_66 = arith.constant 3.200000e+01 : f32
    %188 = vector.broadcast %cst_66 : f32 to vector<10x1xf32>
    %189 = arith.divf %187, %188 : vector<10x1xf32>
    %190 = vector.broadcast %189 : vector<10x1xf32> to vector<10x32xf32>
    %191 = arith.subf %175, %190 : vector<10x32xf32>
    %192 = arith.mulf %191, %191 : vector<10x32xf32>
    %cst_67 = arith.constant dense<0.000000e+00> : vector<10xf32>
    %193 = vector.multi_reduction <add>, %192, %cst_67 [1] : vector<10x32xf32> to vector<10xf32>
    %194 = vector.shape_cast %193 : vector<10xf32> to vector<10x1xf32>
    %cst_68 = arith.constant 3.200000e+01 : f32
    %195 = vector.broadcast %cst_68 : f32 to vector<10x1xf32>
    %196 = arith.divf %194, %195 : vector<10x1xf32>
    %197 = vector.broadcast %189 : vector<10x1xf32> to vector<10x32xf32>
    %198 = arith.subf %175, %197 : vector<10x32xf32>
    %cst_69 = arith.constant 9.99999997E-7 : f32
    %199 = vector.broadcast %cst_69 : f32 to vector<10x1xf32>
    %200 = arith.addf %196, %199 : vector<10x1xf32>
    %201 = math.rsqrt %200 : vector<10x1xf32>
    %202 = vector.broadcast %201 : vector<10x1xf32> to vector<10x32xf32>
    %203 = arith.mulf %198, %202 : vector<10x32xf32>
    %204 = vector.broadcast %178 : vector<1x32xf32> to vector<10x32xf32>
    %205 = arith.mulf %203, %204 : vector<10x32xf32>
    %206 = vector.broadcast %179 : vector<1x32xf32> to vector<10x32xf32>
    %207 = arith.addf %205, %206 : vector<10x32xf32>
    %c1_70 = arith.constant 1 : index
    %c0_71 = arith.constant 0 : index
    %c0_72 = arith.constant 0 : index
    %208 = vector.load %arg4[%c1_70, %c0_71, %c0_72] : memref<2x32x96xf32, #tpu.memory_space<vmem>>, vector<1x32x96xf32>
    %209 = vector.shape_cast %208 : vector<1x32x96xf32> to vector<32x96xf32>
    %cst_73 = arith.constant dense<0.000000e+00> : vector<10x96xf32>
    %210 = tpu.matmul %207, %209, %cst_73 {dimension_numbers = #tpu.dot_dimension_numbers<[1], [0], [0], [1], [0, 0, 1, 1], [], []>} : vector<10x32xf32>, vector<32x96xf32>, vector<10x96xf32> -> vector<10x96xf32>
    %211 = vector.broadcast %180 : vector<1x96xf32> to vector<10x96xf32>
    %212 = arith.addf %210, %211 : vector<10x96xf32>
    %213 = vector.extract_strided_slice %212 {offsets = [0, 0], sizes = [10, 32], strides = [1, 1]} : vector<10x96xf32> to vector<10x32xf32>
    %214 = vector.extract_strided_slice %212 {offsets = [0, 32], sizes = [10, 32], strides = [1, 1]} : vector<10x96xf32> to vector<10x32xf32>
    %215 = vector.extract_strided_slice %212 {offsets = [0, 64], sizes = [10, 32], strides = [1, 1]} : vector<10x96xf32> to vector<10x32xf32>
    %216 = vector.extract_strided_slice %213 {offsets = [0, 0], sizes = [10, 8], strides = [1, 1]} : vector<10x32xf32> to vector<10x8xf32>
    %217 = vector.extract_strided_slice %214 {offsets = [0, 0], sizes = [10, 8], strides = [1, 1]} : vector<10x32xf32> to vector<10x8xf32>
    %218 = vector.extract_strided_slice %215 {offsets = [0, 0], sizes = [10, 8], strides = [1, 1]} : vector<10x32xf32> to vector<10x8xf32>
    %cst_74 = arith.constant dense<0.000000e+00> : vector<10x10xf32>
    %219 = tpu.matmul %216, %217, %cst_74 {dimension_numbers = #tpu.dot_dimension_numbers<[1], [1], [0], [0], [0, 0, 1, 0], [], []>} : vector<10x8xf32>, vector<10x8xf32>, vector<10x10xf32> -> vector<10x10xf32>
    %cst_75 = arith.constant 0.353553385 : f32
    %220 = vector.broadcast %cst_75 : f32 to vector<10x10xf32>
    %221 = arith.mulf %219, %220 : vector<10x10xf32>
    %222 = arith.addf %221, %4 : vector<10x10xf32>
    %cst_76 = arith.constant dense<0xFF800000> : vector<10xf32>
    %223 = vector.multi_reduction <maximumf>, %222, %cst_76 [1] : vector<10x10xf32> to vector<10xf32>
    %224 = vector.shape_cast %223 : vector<10xf32> to vector<10x1xf32>
    %225 = vector.broadcast %224 : vector<10x1xf32> to vector<10x10xf32>
    %226 = arith.subf %222, %225 : vector<10x10xf32>
    %227 = math.exp %226 : vector<10x10xf32>
    %cst_77 = arith.constant dense<0.000000e+00> : vector<10xf32>
    %228 = vector.multi_reduction <add>, %227, %cst_77 [1] : vector<10x10xf32> to vector<10xf32>
    %229 = vector.shape_cast %228 : vector<10xf32> to vector<10x1xf32>
    %230 = tpu.reciprocal %229 {approx = true} : vector<10x1xf32> -> vector<10x1xf32>
    %231 = vector.broadcast %230 : vector<10x1xf32> to vector<10x10xf32>
    %232 = arith.mulf %227, %231 : vector<10x10xf32>
    %cst_78 = arith.constant dense<0.000000e+00> : vector<10x8xf32>
    %233 = tpu.matmul %232, %218, %cst_78 {dimension_numbers = #tpu.dot_dimension_numbers<[1], [0], [0], [1], [0, 0, 1, 1], [], []>} : vector<10x10xf32>, vector<10x8xf32>, vector<10x8xf32> -> vector<10x8xf32>
    %234 = vector.extract_strided_slice %213 {offsets = [0, 8], sizes = [10, 8], strides = [1, 1]} : vector<10x32xf32> to vector<10x8xf32>
    %235 = vector.extract_strided_slice %214 {offsets = [0, 8], sizes = [10, 8], strides = [1, 1]} : vector<10x32xf32> to vector<10x8xf32>
    %236 = vector.extract_strided_slice %215 {offsets = [0, 8], sizes = [10, 8], strides = [1, 1]} : vector<10x32xf32> to vector<10x8xf32>
    %cst_79 = arith.constant dense<0.000000e+00> : vector<10x10xf32>
    %237 = tpu.matmul %234, %235, %cst_79 {dimension_numbers = #tpu.dot_dimension_numbers<[1], [1], [0], [0], [0, 0, 1, 0], [], []>} : vector<10x8xf32>, vector<10x8xf32>, vector<10x10xf32> -> vector<10x10xf32>
    %cst_80 = arith.constant 0.353553385 : f32
    %238 = vector.broadcast %cst_80 : f32 to vector<10x10xf32>
    %239 = arith.mulf %237, %238 : vector<10x10xf32>
    %240 = arith.addf %239, %4 : vector<10x10xf32>
    %cst_81 = arith.constant dense<0xFF800000> : vector<10xf32>
    %241 = vector.multi_reduction <maximumf>, %240, %cst_81 [1] : vector<10x10xf32> to vector<10xf32>
    %242 = vector.shape_cast %241 : vector<10xf32> to vector<10x1xf32>
    %243 = vector.broadcast %242 : vector<10x1xf32> to vector<10x10xf32>
    %244 = arith.subf %240, %243 : vector<10x10xf32>
    %245 = math.exp %244 : vector<10x10xf32>
    %cst_82 = arith.constant dense<0.000000e+00> : vector<10xf32>
    %246 = vector.multi_reduction <add>, %245, %cst_82 [1] : vector<10x10xf32> to vector<10xf32>
    %247 = vector.shape_cast %246 : vector<10xf32> to vector<10x1xf32>
    %248 = tpu.reciprocal %247 {approx = true} : vector<10x1xf32> -> vector<10x1xf32>
    %249 = vector.broadcast %248 : vector<10x1xf32> to vector<10x10xf32>
    %250 = arith.mulf %245, %249 : vector<10x10xf32>
    %cst_83 = arith.constant dense<0.000000e+00> : vector<10x8xf32>
    %251 = tpu.matmul %250, %236, %cst_83 {dimension_numbers = #tpu.dot_dimension_numbers<[1], [0], [0], [1], [0, 0, 1, 1], [], []>} : vector<10x10xf32>, vector<10x8xf32>, vector<10x8xf32> -> vector<10x8xf32>
    %252 = vector.extract_strided_slice %213 {offsets = [0, 16], sizes = [10, 8], strides = [1, 1]} : vector<10x32xf32> to vector<10x8xf32>
    %253 = vector.extract_strided_slice %214 {offsets = [0, 16], sizes = [10, 8], strides = [1, 1]} : vector<10x32xf32> to vector<10x8xf32>
    %254 = vector.extract_strided_slice %215 {offsets = [0, 16], sizes = [10, 8], strides = [1, 1]} : vector<10x32xf32> to vector<10x8xf32>
    %cst_84 = arith.constant dense<0.000000e+00> : vector<10x10xf32>
    %255 = tpu.matmul %252, %253, %cst_84 {dimension_numbers = #tpu.dot_dimension_numbers<[1], [1], [0], [0], [0, 0, 1, 0], [], []>} : vector<10x8xf32>, vector<10x8xf32>, vector<10x10xf32> -> vector<10x10xf32>
    %cst_85 = arith.constant 0.353553385 : f32
    %256 = vector.broadcast %cst_85 : f32 to vector<10x10xf32>
    %257 = arith.mulf %255, %256 : vector<10x10xf32>
    %258 = arith.addf %257, %4 : vector<10x10xf32>
    %cst_86 = arith.constant dense<0xFF800000> : vector<10xf32>
    %259 = vector.multi_reduction <maximumf>, %258, %cst_86 [1] : vector<10x10xf32> to vector<10xf32>
    %260 = vector.shape_cast %259 : vector<10xf32> to vector<10x1xf32>
    %261 = vector.broadcast %260 : vector<10x1xf32> to vector<10x10xf32>
    %262 = arith.subf %258, %261 : vector<10x10xf32>
    %263 = math.exp %262 : vector<10x10xf32>
    %cst_87 = arith.constant dense<0.000000e+00> : vector<10xf32>
    %264 = vector.multi_reduction <add>, %263, %cst_87 [1] : vector<10x10xf32> to vector<10xf32>
    %265 = vector.shape_cast %264 : vector<10xf32> to vector<10x1xf32>
    %266 = tpu.reciprocal %265 {approx = true} : vector<10x1xf32> -> vector<10x1xf32>
    %267 = vector.broadcast %266 : vector<10x1xf32> to vector<10x10xf32>
    %268 = arith.mulf %263, %267 : vector<10x10xf32>
    %cst_88 = arith.constant dense<0.000000e+00> : vector<10x8xf32>
    %269 = tpu.matmul %268, %254, %cst_88 {dimension_numbers = #tpu.dot_dimension_numbers<[1], [0], [0], [1], [0, 0, 1, 1], [], []>} : vector<10x10xf32>, vector<10x8xf32>, vector<10x8xf32> -> vector<10x8xf32>
    %270 = vector.extract_strided_slice %213 {offsets = [0, 24], sizes = [10, 8], strides = [1, 1]} : vector<10x32xf32> to vector<10x8xf32>
    %271 = vector.extract_strided_slice %214 {offsets = [0, 24], sizes = [10, 8], strides = [1, 1]} : vector<10x32xf32> to vector<10x8xf32>
    %272 = vector.extract_strided_slice %215 {offsets = [0, 24], sizes = [10, 8], strides = [1, 1]} : vector<10x32xf32> to vector<10x8xf32>
    %cst_89 = arith.constant dense<0.000000e+00> : vector<10x10xf32>
    %273 = tpu.matmul %270, %271, %cst_89 {dimension_numbers = #tpu.dot_dimension_numbers<[1], [1], [0], [0], [0, 0, 1, 0], [], []>} : vector<10x8xf32>, vector<10x8xf32>, vector<10x10xf32> -> vector<10x10xf32>
    %cst_90 = arith.constant 0.353553385 : f32
    %274 = vector.broadcast %cst_90 : f32 to vector<10x10xf32>
    %275 = arith.mulf %273, %274 : vector<10x10xf32>
    %276 = arith.addf %275, %4 : vector<10x10xf32>
    %cst_91 = arith.constant dense<0xFF800000> : vector<10xf32>
    %277 = vector.multi_reduction <maximumf>, %276, %cst_91 [1] : vector<10x10xf32> to vector<10xf32>
    %278 = vector.shape_cast %277 : vector<10xf32> to vector<10x1xf32>
    %279 = vector.broadcast %278 : vector<10x1xf32> to vector<10x10xf32>
    %280 = arith.subf %276, %279 : vector<10x10xf32>
    %281 = math.exp %280 : vector<10x10xf32>
    %cst_92 = arith.constant dense<0.000000e+00> : vector<10xf32>
    %282 = vector.multi_reduction <add>, %281, %cst_92 [1] : vector<10x10xf32> to vector<10xf32>
    %283 = vector.shape_cast %282 : vector<10xf32> to vector<10x1xf32>
    %284 = tpu.reciprocal %283 {approx = true} : vector<10x1xf32> -> vector<10x1xf32>
    %285 = vector.broadcast %284 : vector<10x1xf32> to vector<10x10xf32>
    %286 = arith.mulf %281, %285 : vector<10x10xf32>
    %cst_93 = arith.constant dense<0.000000e+00> : vector<10x8xf32>
    %287 = tpu.matmul %286, %272, %cst_93 {dimension_numbers = #tpu.dot_dimension_numbers<[1], [0], [0], [1], [0, 0, 1, 1], [], []>} : vector<10x10xf32>, vector<10x8xf32>, vector<10x8xf32> -> vector<10x8xf32>
    %288 = tpu.concatenate %233, %251, %269, %287 in 1 : vector<10x8xf32>, vector<10x8xf32>, vector<10x8xf32>, vector<10x8xf32> -> vector<10x32xf32>
    %c1_94 = arith.constant 1 : index
    %c0_95 = arith.constant 0 : index
    %c0_96 = arith.constant 0 : index
    %289 = vector.load %arg5[%c1_94, %c0_95, %c0_96] : memref<2x32x32xf32, #tpu.memory_space<vmem>>, vector<1x32x32xf32>
    %290 = vector.shape_cast %289 : vector<1x32x32xf32> to vector<32x32xf32>
    %cst_97 = arith.constant dense<0.000000e+00> : vector<10x32xf32>
    %291 = tpu.matmul %288, %290, %cst_97 {dimension_numbers = #tpu.dot_dimension_numbers<[1], [0], [0], [1], [0, 0, 1, 1], [], []>} : vector<10x32xf32>, vector<32x32xf32>, vector<10x32xf32> -> vector<10x32xf32>
    %292 = arith.addf %175, %291 : vector<10x32xf32>
    %293 = vector.broadcast %181 : vector<1x32xf32> to vector<10x32xf32>
    %294 = arith.addf %292, %293 : vector<10x32xf32>
    %cst_98 = arith.constant dense<0.000000e+00> : vector<10xf32>
    %295 = vector.multi_reduction <add>, %294, %cst_98 [1] : vector<10x32xf32> to vector<10xf32>
    %296 = vector.shape_cast %295 : vector<10xf32> to vector<10x1xf32>
    %cst_99 = arith.constant 3.200000e+01 : f32
    %297 = vector.broadcast %cst_99 : f32 to vector<10x1xf32>
    %298 = arith.divf %296, %297 : vector<10x1xf32>
    %299 = vector.broadcast %298 : vector<10x1xf32> to vector<10x32xf32>
    %300 = arith.subf %294, %299 : vector<10x32xf32>
    %301 = arith.mulf %300, %300 : vector<10x32xf32>
    %cst_100 = arith.constant dense<0.000000e+00> : vector<10xf32>
    %302 = vector.multi_reduction <add>, %301, %cst_100 [1] : vector<10x32xf32> to vector<10xf32>
    %303 = vector.shape_cast %302 : vector<10xf32> to vector<10x1xf32>
    %cst_101 = arith.constant 3.200000e+01 : f32
    %304 = vector.broadcast %cst_101 : f32 to vector<10x1xf32>
    %305 = arith.divf %303, %304 : vector<10x1xf32>
    %306 = vector.broadcast %298 : vector<10x1xf32> to vector<10x32xf32>
    %307 = arith.subf %294, %306 : vector<10x32xf32>
    %cst_102 = arith.constant 9.99999997E-7 : f32
    %308 = vector.broadcast %cst_102 : f32 to vector<10x1xf32>
    %309 = arith.addf %305, %308 : vector<10x1xf32>
    %310 = math.rsqrt %309 : vector<10x1xf32>
    %311 = vector.broadcast %310 : vector<10x1xf32> to vector<10x32xf32>
    %312 = arith.mulf %307, %311 : vector<10x32xf32>
    %313 = vector.broadcast %182 : vector<1x32xf32> to vector<10x32xf32>
    %314 = arith.mulf %312, %313 : vector<10x32xf32>
    %315 = vector.broadcast %183 : vector<1x32xf32> to vector<10x32xf32>
    %316 = arith.addf %314, %315 : vector<10x32xf32>
    %c1_103 = arith.constant 1 : index
    %c0_104 = arith.constant 0 : index
    %c0_105 = arith.constant 0 : index
    %317 = vector.load %arg6[%c1_103, %c0_104, %c0_105] : memref<2x32x128xf32, #tpu.memory_space<vmem>>, vector<1x32x128xf32>
    %318 = vector.shape_cast %317 : vector<1x32x128xf32> to vector<32x128xf32>
    %cst_106 = arith.constant dense<0.000000e+00> : vector<10x128xf32>
    %319 = tpu.matmul %316, %318, %cst_106 {dimension_numbers = #tpu.dot_dimension_numbers<[1], [0], [0], [1], [0, 0, 1, 1], [], []>} : vector<10x32xf32>, vector<32x128xf32>, vector<10x128xf32> -> vector<10x128xf32>
    %320 = vector.broadcast %184 : vector<1x128xf32> to vector<10x128xf32>
    %321 = arith.addf %319, %320 : vector<10x128xf32>
    %cst_107 = arith.constant 5.000000e-01 : f32
    %322 = vector.broadcast %cst_107 : f32 to vector<10x128xf32>
    %323 = arith.mulf %322, %321 : vector<10x128xf32>
    %cst_108 = arith.constant 4.471500e-02 : f32
    %324 = vector.broadcast %cst_108 : f32 to vector<10x128xf32>
    %325 = arith.mulf %324, %321 : vector<10x128xf32>
    %326 = arith.mulf %325, %321 : vector<10x128xf32>
    %327 = arith.mulf %326, %321 : vector<10x128xf32>
    %328 = arith.addf %321, %327 : vector<10x128xf32>
    %cst_109 = arith.constant 0.797884583 : f32
    %329 = vector.broadcast %cst_109 : f32 to vector<10x128xf32>
    %330 = arith.mulf %329, %328 : vector<10x128xf32>
    %331 = math.tanh %330 : vector<10x128xf32>
    %cst_110 = arith.constant 1.000000e+00 : f32
    %332 = vector.broadcast %cst_110 : f32 to vector<10x128xf32>
    %333 = arith.addf %332, %331 : vector<10x128xf32>
    %334 = arith.mulf %323, %333 : vector<10x128xf32>
    %c1_111 = arith.constant 1 : index
    %c0_112 = arith.constant 0 : index
    %c0_113 = arith.constant 0 : index
    %335 = vector.load %arg7[%c1_111, %c0_112, %c0_113] : memref<2x128x32xf32, #tpu.memory_space<vmem>>, vector<1x128x32xf32>
    %336 = vector.shape_cast %335 : vector<1x128x32xf32> to vector<128x32xf32>
    %cst_114 = arith.constant dense<0.000000e+00> : vector<10x32xf32>
    %337 = tpu.matmul %334, %336, %cst_114 {dimension_numbers = #tpu.dot_dimension_numbers<[1], [0], [0], [1], [0, 0, 1, 1], [], []>} : vector<10x128xf32>, vector<128x32xf32>, vector<10x32xf32> -> vector<10x32xf32>
    %338 = arith.addf %294, %337 : vector<10x32xf32>
    %339 = vector.broadcast %185 : vector<1x32xf32> to vector<10x32xf32>
    %340 = arith.addf %338, %339 : vector<10x32xf32>
    %cst_115 = arith.constant dense<0.000000e+00> : vector<10xf32>
    %341 = vector.multi_reduction <add>, %340, %cst_115 [1] : vector<10x32xf32> to vector<10xf32>
    %342 = vector.shape_cast %341 : vector<10xf32> to vector<10x1xf32>
    %cst_116 = arith.constant 3.200000e+01 : f32
    %343 = vector.broadcast %cst_116 : f32 to vector<10x1xf32>
    %344 = arith.divf %342, %343 : vector<10x1xf32>
    %345 = vector.broadcast %344 : vector<10x1xf32> to vector<10x32xf32>
    %346 = arith.subf %340, %345 : vector<10x32xf32>
    %347 = arith.mulf %346, %346 : vector<10x32xf32>
    %cst_117 = arith.constant dense<0.000000e+00> : vector<10xf32>
    %348 = vector.multi_reduction <add>, %347, %cst_117 [1] : vector<10x32xf32> to vector<10xf32>
    %349 = vector.shape_cast %348 : vector<10xf32> to vector<10x1xf32>
    %cst_118 = arith.constant 3.200000e+01 : f32
    %350 = vector.broadcast %cst_118 : f32 to vector<10x1xf32>
    %351 = arith.divf %349, %350 : vector<10x1xf32>
    %352 = vector.broadcast %344 : vector<10x1xf32> to vector<10x32xf32>
    %353 = arith.subf %340, %352 : vector<10x32xf32>
    %cst_119 = arith.constant 9.99999997E-7 : f32
    %354 = vector.broadcast %cst_119 : f32 to vector<10x1xf32>
    %355 = arith.addf %351, %354 : vector<10x1xf32>
    %356 = math.rsqrt %355 : vector<10x1xf32>
    %357 = vector.broadcast %356 : vector<10x1xf32> to vector<10x32xf32>
    %358 = arith.mulf %353, %357 : vector<10x32xf32>
    %359 = vector.broadcast %1 : vector<1x32xf32> to vector<10x32xf32>
    %360 = arith.mulf %358, %359 : vector<10x32xf32>
    %361 = vector.broadcast %2 : vector<1x32xf32> to vector<10x32xf32>
    %362 = arith.addf %360, %361 : vector<10x32xf32>
    %363 = vector.extract_strided_slice %362 {offsets = [0, 0], sizes = [2, 32], strides = [1, 1]} : vector<10x32xf32> to vector<2x32xf32>
    %c0_120 = arith.constant 0 : index
    %c0_121 = arith.constant 0 : index
    %364 = vector.load %arg9[%c0_120, %c0_121] : memref<32x128xf32, #tpu.memory_space<vmem>>, vector<32x128xf32>
    %cst_122 = arith.constant dense<0.000000e+00> : vector<2x128xf32>
    %365 = tpu.matmul %363, %364, %cst_122 {dimension_numbers = #tpu.dot_dimension_numbers<[1], [0], [0], [1], [0, 0, 1, 1], [], []>} : vector<2x32xf32>, vector<32x128xf32>, vector<2x128xf32> -> vector<2x128xf32>
    %366 = vector.broadcast %3 : vector<1x128xf32> to vector<2x128xf32>
    %367 = arith.addf %365, %366 : vector<2x128xf32>
    %c0_123 = arith.constant 0 : index
    %c0_124 = arith.constant 0 : index
    %368 = vector.load %arg10[%c0_123, %c0_124] : memref<2x128xf32, #tpu.memory_space<vmem>>, vector<2x128xf32>
    tpu.vector_store %arg10[%c0_123, %c0_124], %367 {strides = array<i32>} : memref<2x128xf32, #tpu.memory_space<vmem>>, vector<2x128xf32>,
    return
  }
  func.func @transform_0(%arg0: i32) -> (i32, i32) {
    %c0_i32 = arith.constant 0 : i32
    %c0_i32_0 = arith.constant 0 : i32
    %c0_i32_1 = arith.constant 0 : i32
    return %c0_i32, %c0_i32_0 : i32, i32
  }
  func.func @transform_1(%arg0: i32) -> (i32, i32) {
    %c0_i32 = arith.constant 0 : i32
    %c0_i32_0 = arith.constant 0 : i32
    %c0_i32_1 = arith.constant 0 : i32
    return %c0_i32, %c0_i32_0 : i32, i32
  }
  func.func @transform_2(%arg0: i32) -> (i32, i32) {
    %c0_i32 = arith.constant 0 : i32
    %c0_i32_0 = arith.constant 0 : i32
    %c0_i32_1 = arith.constant 0 : i32
    return %c0_i32, %c0_i32_0 : i32, i32
  }
  func.func @transform_3(%arg0: i32) -> (i32, i32, i32) {
    %c0_i32 = arith.constant 0 : i32
    %c0_i32_0 = arith.constant 0 : i32
    %c0_i32_1 = arith.constant 0 : i32
    %c0_i32_2 = arith.constant 0 : i32
    return %c0_i32, %c0_i32_0, %c0_i32_1 : i32, i32, i32
  }
  func.func @transform_4(%arg0: i32) -> (i32, i32, i32) {
    %c0_i32 = arith.constant 0 : i32
    %c0_i32_0 = arith.constant 0 : i32
    %c0_i32_1 = arith.constant 0 : i32
    %c0_i32_2 = arith.constant 0 : i32
    return %c0_i32, %c0_i32_0, %c0_i32_1 : i32, i32, i32
  }
  func.func @transform_5(%arg0: i32) -> (i32, i32, i32) {
    %c0_i32 = arith.constant 0 : i32
    %c0_i32_0 = arith.constant 0 : i32
    %c0_i32_1 = arith.constant 0 : i32
    %c0_i32_2 = arith.constant 0 : i32
    return %c0_i32, %c0_i32_0, %c0_i32_1 : i32, i32, i32
  }
  func.func @transform_6(%arg0: i32) -> (i32, i32, i32) {
    %c0_i32 = arith.constant 0 : i32
    %c0_i32_0 = arith.constant 0 : i32
    %c0_i32_1 = arith.constant 0 : i32
    %c0_i32_2 = arith.constant 0 : i32
    return %c0_i32, %c0_i32_0, %c0_i32_1 : i32, i32, i32
  }
  func.func @transform_7(%arg0: i32) -> (i32, i32, i32) {
    %c0_i32 = arith.constant 0 : i32
    %c0_i32_0 = arith.constant 0 : i32
    %c0_i32_1 = arith.constant 0 : i32
    %c0_i32_2 = arith.constant 0 : i32
    return %c0_i32, %c0_i32_0, %c0_i32_1 : i32, i32, i32
  }
  func.func @transform_8(%arg0: i32) -> (i32, i32) {
    %c0_i32 = arith.constant 0 : i32
    %c0_i32_0 = arith.constant 0 : i32
    %c0_i32_1 = arith.constant 0 : i32
    return %c0_i32, %c0_i32_0 : i32, i32
  }
  func.func @transform_9(%arg0: i32) -> (i32, i32) {
    %c0_i32 = arith.constant 0 : i32
    %c0_i32_0 = arith.constant 0 : i32
    %c0_i32_1 = arith.constant 0 : i32
    return %c0_i32, %c0_i32_0 : i32, i32
  }
}

</mosaic_0001>

<llo_original>
// kernel: _lambda_.1
$region0: #{_lambda_.1}
  #allocation0 [shape = 'u32[]', space=smem, size = 0x4, offset = 0x4, fixed_abs, tag = 'smem constant byte address 0x4 - core index']
  #allocation1 [shape = 'u32[72,128]{1,0:T(1,128)}', space=vmem, size = 0x9000, scoped, tag = 'internal scratch']
  %s0 = inlined_call_operand.vmem [shape: f32[8,768], index: 0, kind: input, shape index: {}]
  %s1 = inlined_call_operand.vmem [shape: f32[768,32], index: 1, kind: input, shape index: {}]
  %s2 = inlined_call_operand.vmem [shape: f32[24,128], index: 2, kind: input, shape index: {}]
  %s3 = inlined_call_operand.vmem [shape: f32[2,32,96], index: 3, kind: input, shape index: {}]
  %s4 = inlined_call_operand.vmem [shape: f32[2,32,32], index: 4, kind: input, shape index: {}]
  %s5 = inlined_call_operand.vmem [shape: f32[2,32,128], index: 5, kind: input, shape index: {}]
  %s6 = inlined_call_operand.vmem [shape: f32[2,128,32], index: 6, kind: input, shape index: {}]
  %s7 = inlined_call_operand.vmem [shape: f32[2,8,128], index: 7, kind: input, shape index: {}]
  %s8 = inlined_call_operand.vmem [shape: f32[32,128], index: 8, kind: input, shape index: {}]
  %s9 = inlined_call_operand.vmem [shape: f32[2,128], index: 9, kind: output, shape index: {}]
  %s10 = sld [smem:[#allocation0]]
  $region46: #{_lambda_.1} parent=0
    _
  %s12 = ssub.s32 1, %s10
  %s13 = scalar_select 0, %s12, %s10
  // Predicated region
  $region2: #{_lambda_.1} parent=0 // pred_check
    _
  $region3: #{_lambda_.1} parent=0 // pred_check_branch
    %15 = sbr.rel (0) target = $region5
  $region4: #{_lambda_.1} parent=0 // pred_region
    _
  $region5: #{_lambda_.1} parent=0 // pred_fallthru
    _
  // Predicated region
  $region6: #{_lambda_.1} parent=0 // pred_check
    _
  $region7: #{_lambda_.1} parent=0 // pred_check_branch
    %17 = sbr.rel (0) target = $region9
  $region8: #{_lambda_.1} parent=0 // pred_region
    _
  $region9: #{_lambda_.1} parent=0 // pred_fallthru
    _
  // Predicated region
  $region10: #{_lambda_.1} parent=0 // pred_check
    _
  $region11: #{_lambda_.1} parent=0 // pred_check_branch
    %19 = sbr.rel (0) target = $region13
  $region12: #{_lambda_.1} parent=0 // pred_region
    _
  $region13: #{_lambda_.1} parent=0 // pred_fallthru
    _
  // Predicated region
  $region14: #{_lambda_.1} parent=0 // pred_check
    _
  $region15: #{_lambda_.1} parent=0 // pred_check_branch
    %21 = sbr.rel (0) target = $region17
  $region16: #{_lambda_.1} parent=0 // pred_region
    _
  $region17: #{_lambda_.1} parent=0 // pred_fallthru
    _
  // Predicated region
  $region18: #{_lambda_.1} parent=0 // pred_check
    _
  $region19: #{_lambda_.1} parent=0 // pred_check_branch
    %23 = sbr.rel (0) target = $region21
  $region20: #{_lambda_.1} parent=0 // pred_region
    _
  $region21: #{_lambda_.1} parent=0 // pred_fallthru
    _
  // Predicated region
  $region22: #{_lambda_.1} parent=0 // pred_check
    _
  $region23: #{_lambda_.1} parent=0 // pred_check_branch
    %25 = sbr.rel (0) target = $region25
  $region24: #{_lambda_.1} parent=0 // pred_region
    _
  $region25: #{_lambda_.1} parent=0 // pred_fallthru
    _
  // Predicated region
  $region26: #{_lambda_.1} parent=0 // pred_check
    _
  $region27: #{_lambda_.1} parent=0 // pred_check_branch
    %27 = sbr.rel (0) target = $region29
  $region28: #{_lambda_.1} parent=0 // pred_region
    _
  $region29: #{_lambda_.1} parent=0 // pred_fallthru
    _
  // Predicated region
  $region30: #{_lambda_.1} parent=0 // pred_check
    _
  $region31: #{_lambda_.1} parent=0 // pred_check_branch
    %29 = sbr.rel (0) target = $region33
  $region32: #{_lambda_.1} parent=0 // pred_region
    _
  $region33: #{_lambda_.1} parent=0 // pred_fallthru
    _
  // Predicated region
  $region34: #{_lambda_.1} parent=0 // pred_check
    _
  $region35: #{_lambda_.1} parent=0 // pred_check_branch
    %31 = sbr.rel (0) target = $region37
  $region36: #{_lambda_.1} parent=0 // pred_region
    _
  $region37: #{_lambda_.1} parent=0 // pred_fallthru
    _
  %v32 = vld [vmem:[%s2] sm:$0xff]
  %v33 = vld [vmem:[%s2 + $0x8] sm:$0x3]
  %v34 = vld [vmem:[%s2 + $0xa] sm:$0x1]
  %v35 = vld [vmem:[%s2 + $0xb] sm:$0x1]
  %v36 = vld [vmem:[%s2 + $0xc] sm:$0x1]
  %v37 = vld [vmem:[%s2 + $0xd] sm:$0xff]
  %v38 = vld [vmem:[%s2 + $0x15] sm:$0x3]
  %v39 = vld [vmem:[%s0] sm:$0xff]
  %v40 = vld [vmem:[%s0 + $0x8] sm:$0xff]
  %v41 = vld [vmem:[%s0 + $0x10] sm:$0xff]
  %v42 = vld [vmem:[%s0 + $0x18] sm:$0xff]
  %v43 = vld [vmem:[%s0 + $0x20] sm:$0xff]
  %v44 = vld [vmem:[%s0 + $0x28] sm:$0xff]
  %v45 = vld [vmem:[%s1] sm:$0xff]
  %v46 = vld [vmem:[%s1 + $0x8] sm:$0xff]
  %v47 = vld [vmem:[%s1 + $0x10] sm:$0xff]
  %v48 = vld [vmem:[%s1 + $0x18] sm:$0xff]
  %v49 = vld [vmem:[%s1 + $0x20] sm:$0xff]
  %v50 = vld [vmem:[%s1 + $0x28] sm:$0xff]
  %v51 = vld [vmem:[%s1 + $0x30] sm:$0xff]
  %v52 = vld [vmem:[%s1 + $0x38] sm:$0xff]
  %v53 = vld [vmem:[%s1 + $0x40] sm:$0xff]
  %v54 = vld [vmem:[%s1 + $0x48] sm:$0xff]
  %v55 = vld [vmem:[%s1 + $0x50] sm:$0xff]
  %v56 = vld [vmem:[%s1 + $0x58] sm:$0xff]
  %v57 = vld [vmem:[%s1 + $0x60] sm:$0xff]
  %v58 = vld [vmem:[%s1 + $0x68] sm:$0xff]
  %v59 = vld [vmem:[%s1 + $0x70] sm:$0xff]
  %v60 = vld [vmem:[%s1 + $0x78] sm:$0xff]
  %v61 = vld [vmem:[%s1 + $0x80] sm:$0xff]
  %v62 = vld [vmem:[%s1 + $0x88] sm:$0xff]
  %v63 = vld [vmem:[%s1 + $0x90] sm:$0xff]
  %v64 = vld [vmem:[%s1 + $0x98] sm:$0xff]
  %v65 = vld [vmem:[%s1 + $0xa0] sm:$0xff]
  %v66 = vld [vmem:[%s1 + $0xa8] sm:$0xff]
  %v67 = vld [vmem:[%s1 + $0xb0] sm:$0xff]
  %v68 = vld [vmem:[%s1 + $0xb8] sm:$0xff]
  %v69 = vld [vmem:[%s1 + $0xc0] sm:$0xff]
  %v70 = vld [vmem:[%s1 + $0xc8] sm:$0xff]
  %v71 = vld [vmem:[%s1 + $0xd0] sm:$0xff]
  %v72 = vld [vmem:[%s1 + $0xd8] sm:$0xff]
  %v73 = vld [vmem:[%s1 + $0xe0] sm:$0xff]
  %v74 = vld [vmem:[%s1 + $0xe8] sm:$0xff]
  %v75 = vld [vmem:[%s1 + $0xf0] sm:$0xff]
  %v76 = vld [vmem:[%s1 + $0xf8] sm:$0xff]
  %v77 = vld [vmem:[%s1 + $0x100] sm:$0xff]
  %v78 = vld [vmem:[%s1 + $0x108] sm:$0xff]
  %v79 = vld [vmem:[%s1 + $0x110] sm:$0xff]
  %v80 = vld [vmem:[%s1 + $0x118] sm:$0xff]
  %v81 = vld [vmem:[%s1 + $0x120] sm:$0xff]
  %v82 = vld [vmem:[%s1 + $0x128] sm:$0xff]
  %v83 = vld [vmem:[%s1 + $0x130] sm:$0xff]
  %v84 = vld [vmem:[%s1 + $0x138] sm:$0xff]
  %v85 = vld [vmem:[%s1 + $0x140] sm:$0xff]
  %v86 = vld [vmem:[%s1 + $0x148] sm:$0xff]
  %v87 = vld [vmem:[%s1 + $0x150] sm:$0xff]
  %v88 = vld [vmem:[%s1 + $0x158] sm:$0xff]
  %v89 = vld [vmem:[%s1 + $0x160] sm:$0xff]
  %v90 = vld [vmem:[%s1 + $0x168] sm:$0xff]
  %v91 = vld [vmem:[%s1 + $0x170] sm:$0xff]
  %v92 = vld [vmem:[%s1 + $0x178] sm:$0xff]
  %v93 = vld [vmem:[%s1 + $0x180] sm:$0xff]
  %v94 = vld [vmem:[%s1 + $0x188] sm:$0xff]
  %v95 = vld [vmem:[%s1 + $0x190] sm:$0xff]
  %v96 = vld [vmem:[%s1 + $0x198] sm:$0xff]
  %v97 = vld [vmem:[%s1 + $0x1a0] sm:$0xff]
  %v98 = vld [vmem:[%s1 + $0x1a8] sm:$0xff]
  %v99 = vld [vmem:[%s1 + $0x1b0] sm:$0xff]
  %v100 = vld [vmem:[%s1 + $0x1b8] sm:$0xff]
  %v101 = vld [vmem:[%s1 + $0x1c0] sm:$0xff]
  %v102 = vld [vmem:[%s1 + $0x1c8] sm:$0xff]
  %v103 = vld [vmem:[%s1 + $0x1d0] sm:$0xff]
  %v104 = vld [vmem:[%s1 + $0x1d8] sm:$0xff]
  %v105 = vld [vmem:[%s1 + $0x1e0] sm:$0xff]
  %v106 = vld [vmem:[%s1 + $0x1e8] sm:$0xff]
  %v107 = vld [vmem:[%s1 + $0x1f0] sm:$0xff]
  %v108 = vld [vmem:[%s1 + $0x1f8] sm:$0xff]
  %v109 = vld [vmem:[%s1 + $0x200] sm:$0xff]
  %v110 = vld [vmem:[%s1 + $0x208] sm:$0xff]
  %v111 = vld [vmem:[%s1 + $0x210] sm:$0xff]
  %v112 = vld [vmem:[%s1 + $0x218] sm:$0xff]
  %v113 = vld [vmem:[%s1 + $0x220] sm:$0xff]
  %v114 = vld [vmem:[%s1 + $0x228] sm:$0xff]
  %v115 = vld [vmem:[%s1 + $0x230] sm:$0xff]
  %v116 = vld [vmem:[%s1 + $0x238] sm:$0xff]
  %v117 = vld [vmem:[%s1 + $0x240] sm:$0xff]
  %v118 = vld [vmem:[%s1 + $0x248] sm:$0xff]
  %v119 = vld [vmem:[%s1 + $0x250] sm:$0xff]
  %v120 = vld [vmem:[%s1 + $0x258] sm:$0xff]
  %v121 = vld [vmem:[%s1 + $0x260] sm:$0xff]
  %v122 = vld [vmem:[%s1 + $0x268] sm:$0xff]
  %v123 = vld [vmem:[%s1 + $0x270] sm:$0xff]
  %v124 = vld [vmem:[%s1 + $0x278] sm:$0xff]
  %v125 = vld [vmem:[%s1 + $0x280] sm:$0xff]
  %v126 = vld [vmem:[%s1 + $0x288] sm:$0xff]
  %v127 = vld [vmem:[%s1 + $0x290] sm:$0xff]
  %v128 = vld [vmem:[%s1 + $0x298] sm:$0xff]
  %v129 = vld [vmem:[%s1 + $0x2a0] sm:$0xff]
  %v130 = vld [vmem:[%s1 + $0x2a8] sm:$0xff]
  %v131 = vld [vmem:[%s1 + $0x2b0] sm:$0xff]
  %v132 = vld [vmem:[%s1 + $0x2b8] sm:$0xff]
  %v133 = vld [vmem:[%s1 + $0x2c0] sm:$0xff]
  %v134 = vld [vmem:[%s1 + $0x2c8] sm:$0xff]
  %v135 = vld [vmem:[%s1 + $0x2d0] sm:$0xff]
  %v136 = vld [vmem:[%s1 + $0x2d8] sm:$0xff]
  %v137 = vld [vmem:[%s1 + $0x2e0] sm:$0xff]
  %v138 = vld [vmem:[%s1 + $0x2e8] sm:$0xff]
  %v139 = vld [vmem:[%s1 + $0x2f0] sm:$0xff]
  %v140 = vld [vmem:[%s1 + $0x2f8] sm:$0xff]
  %141 = vmatpush.msra.mxu0 %v60
  %142 = vmatpush.msra.mxu0 %v59
  %143 = vmatpush.msra.mxu0 %v58
  %144 = vmatpush.msra.mxu0 %v57
  %145 = vmatpush.msra.mxu0 %v56
  %146 = vmatpush.msra.mxu0 %v55
  %147 = vmatpush.msra.mxu0 %v54
  %148 = vmatpush.msra.mxu0 %v53
  %149 = vmatpush.msra.mxu0 %v52
  %150 = vmatpush.msra.mxu0 %v51
  %151 = vmatpush.msra.mxu0 %v50
  %152 = vmatpush.msra.mxu0 %v49
  %153 = vmatpush.msra.mxu0 %v48
  %154 = vmatpush.msra.mxu0 %v47
  %155 = vmatpush.msra.mxu0 %v46
  %156 = vmatpush.msra.mxu0 %v45
  %157 = vmatmul.f32.gmra.mxu0 %v39
  %v158 = vpop.f32.mrf.mxu0
  %v159 = vadd.f32 0.0, %v158
  %160 = vdwg.mxu0
  %161 = vmatpush.msra.mxu0 %v76
  %162 = vmatpush.msra.mxu0 %v75
  %163 = vmatpush.msra.mxu0 %v74
  %164 = vmatpush.msra.mxu0 %v73
  %165 = vmatpush.msra.mxu0 %v72
  %166 = vmatpush.msra.mxu0 %v71
  %167 = vmatpush.msra.mxu0 %v70
  %168 = vmatpush.msra.mxu0 %v69
  %169 = vmatpush.msra.mxu0 %v68
  %170 = vmatpush.msra.mxu0 %v67
  %171 = vmatpush.msra.mxu0 %v66
  %172 = vmatpush.msra.mxu0 %v65
  %173 = vmatpush.msra.mxu0 %v64
  %174 = vmatpush.msra.mxu0 %v63
  %175 = vmatpush.msra.mxu0 %v62
  %176 = vmatpush.msra.mxu0 %v61
  %177 = vmatmul.f32.gmra.mxu0 %v40
  %v178 = vpop.f32.mrf.mxu0
  %v179 = vadd.f32 %v159, %v178
  %180 = vdwg.mxu0
  %181 = vmatpush.msra.mxu0 %v92
  %182 = vmatpush.msra.mxu0 %v91
  %183 = vmatpush.msra.mxu0 %v90
  %184 = vmatpush.msra.mxu0 %v89
  %185 = vmatpush.msra.mxu0 %v88
  %186 = vmatpush.msra.mxu0 %v87
  %187 = vmatpush.msra.mxu0 %v86
  %188 = vmatpush.msra.mxu0 %v85
  %189 = vmatpush.msra.mxu0 %v84
  %190 = vmatpush.msra.mxu0 %v83
  %191 = vmatpush.msra.mxu0 %v82
  %192 = vmatpush.msra.mxu0 %v81
  %193 = vmatpush.msra.mxu0 %v80
  %194 = vmatpush.msra.mxu0 %v79
  %195 = vmatpush.msra.mxu0 %v78
  %196 = vmatpush.msra.mxu0 %v77
  %197 = vmatmul.f32.gmra.mxu0 %v41
  %v198 = vpop.f32.mrf.mxu0
  %v199 = vadd.f32 %v179, %v198
  %200 = vdwg.mxu0
  %201 = vmatpush.msra.mxu0 %v108
  %202 = vmatpush.msra.mxu0 %v107
  %203 = vmatpush.msra.mxu0 %v106
  %204 = vmatpush.msra.mxu0 %v105
  %205 = vmatpush.msra.mxu0 %v104
  %206 = vmatpush.msra.mxu0 %v103
  %207 = vmatpush.msra.mxu0 %v102
  %208 = vmatpush.msra.mxu0 %v101
  %209 = vmatpush.msra.mxu0 %v100
  %210 = vmatpush.msra.mxu0 %v99
  %211 = vmatpush.msra.mxu0 %v98
  %212 = vmatpush.msra.mxu0 %v97
  %213 = vmatpush.msra.mxu0 %v96
  %214 = vmatpush.msra.mxu0 %v95
  %215 = vmatpush.msra.mxu0 %v94
  %216 = vmatpush.msra.mxu0 %v93
  %217 = vmatmul.f32.gmra.mxu0 %v42
  %v218 = vpop.f32.mrf.mxu0
  %v219 = vadd.f32 %v199, %v218
  %220 = vdwg.mxu0
  %221 = vmatpush.msra.mxu0 %v124
  %222 = vmatpush.msra.mxu0 %v123
  %223 = vmatpush.msra.mxu0 %v122
  %224 = vmatpush.msra.mxu0 %v121
  %225 = vmatpush.msra.mxu0 %v120
  %226 = vmatpush.msra.mxu0 %v119
  %227 = vmatpush.msra.mxu0 %v118
  %228 = vmatpush.msra.mxu0 %v117
  %229 = vmatpush.msra.mxu0 %v116
  %230 = vmatpush.msra.mxu0 %v115
  %231 = vmatpush.msra.mxu0 %v114
  %232 = vmatpush.msra.mxu0 %v113
  %233 = vmatpush.msra.mxu0 %v112
  %234 = vmatpush.msra.mxu0 %v111
  %235 = vmatpush.msra.mxu0 %v110
  %236 = vmatpush.msra.mxu0 %v109
  %237 = vmatmul.f32.gmra.mxu0 %v43
  %v238 = vpop.f32.mrf.mxu0
  %v239 = vadd.f32 %v219, %v238
  %240 = vdwg.mxu0
  %241 = vmatpush.msra.mxu0 %v140
  %242 = vmatpush.msra.mxu0 %v139
  %243 = vmatpush.msra.mxu0 %v138
  %244 = vmatpush.msra.mxu0 %v137
  %245 = vmatpush.msra.mxu0 %v136
  %246 = vmatpush.msra.mxu0 %v135
  %247 = vmatpush.msra.mxu0 %v134
  %248 = vmatpush.msra.mxu0 %v133
  %249 = vmatpush.msra.mxu0 %v132
  %250 = vmatpush.msra.mxu0 %v131
  %251 = vmatpush.msra.mxu0 %v130
  %252 = vmatpush.msra.mxu0 %v129
  %253 = vmatpush.msra.mxu0 %v128
  %254 = vmatpush.msra.mxu0 %v127
  %255 = vmatpush.msra.mxu0 %v126
  %256 = vmatpush.msra.mxu0 %v125
  %257 = vmatmul.f32.gmra.mxu0 %v44
  %v258 = vpop.f32.mrf.mxu0
  %v259 = vadd.f32 %v239, %v258
  %260 = vdwg.mxu0
  %v262 = vrot.slane %v259, 6
  %vm264 = vcmask 1041408
  %v265 = vsel %vm264, 0.0, %v262
  %v266 = vadd.f32 %v265, %v32
  %v267 = vadd.f32 %v262, %v33
  %v268 = vld [vmem:[%s7] sm:$0xff]
  %vm269 = vcmask 261120
  %v270 = vsel %vm269, %v266, 0.0
  %271 = vadd.xlane.f32.xlu0 %v270
  %v272 = vpop.xlane.xlu0 %271
  %vm273 = vcmask 254976
  %v274 = vsel %vm273, %v267, 0.0
  %275 = vadd.xlane.f32.xlu0 %v274
  %v276 = vpop.xlane.xlu0 %275
  %v277 = vrcp.pop 32.0
  %v278 = vmul.f32 32.0, %v277
  %v279 = vsub.f32 1.0, %v278
  %v280 = vmul.f32 %v277, %v279
  %v281 = vadd.f32 %v277, %v280
  %vm282 = vweird.f32 %v277
  %v283 = vsel %vm282, %v277, %v281
  %v284 = vmul.f32 %v272, %v283
  %v285 = vmul.f32 %v276, %v283
  %v286 = vsub.f32 %v266, %v284
  %v287 = vsub.f32 %v267, %v285
  %v288 = vmul.f32 %v286, %v286
  %v289 = vmul.f32 %v287, %v287
  %v290 = vsel %vm269, %v288, 0.0
  %291 = vadd.xlane.f32.xlu0 %v290
  %v292 = vpop.xlane.xlu0 %291
  %v293 = vsel %vm273, %v289, 0.0
  %294 = vadd.xlane.f32.xlu0 %v293
  %v295 = vpop.xlane.xlu0 %294
  %v296 = vmul.f32 %v292, %v283
  %v297 = vmul.f32 %v295, %v283
  %v298 = vadd.f32 %v296, 1e-06
  %v299 = vadd.f32 %v297, 1e-06
  %v300 = vrsqrt.pop %v298
  %v301 = vmul.f32 %v300, %v298
  %v302 = vmul.f32 %v301, %v300
  %v303 = vmul.f32 0.5, %v302
  %v304 = vsub.f32 1.5, %v303
  %v305 = vmul.f32 %v300, %v304
  %vm306 = vweird.f32 %v298
  %vm307 = vweird.f32 %v300
  %vm308 = vmor %vm306, %vm307
  %v309 = vsel %vm308, %v300, %v305
  %v310 = vrsqrt.pop %v299
  %v311 = vmul.f32 %v310, %v299
  %v312 = vmul.f32 %v311, %v310
  %v313 = vmul.f32 0.5, %v312
  %v314 = vsub.f32 1.5, %v313
  %v315 = vmul.f32 %v310, %v314
  %vm316 = vweird.f32 %v299
  %vm317 = vweird.f32 %v310
  %vm318 = vmor %vm316, %vm317
  %v319 = vsel %vm318, %v310, %v315
  %v320 = vmul.f32 %v286, %v309
  %v321 = vmul.f32 %v287, %v319
  %v322 = vperm.slane %v268, 0
  %v323 = vmul.f32 %v320, %v322
  %v324 = vmul.f32 %v321, %v322
  %v325 = vperm.slane %v268, 1
  %v326 = vadd.f32 %v323, %v325
  %v327 = vadd.f32 %v324, %v325
  %v328 = vld [vmem:[%s3] sm:$0xff]
  %v329 = vld [vmem:[%s3 + $0x8] sm:$0xff]
  %v330 = vld [vmem:[%s3 + $0x10] sm:$0xff]
  %v331 = vld [vmem:[%s3 + $0x18] sm:$0xff]
  %v332 = vperm.slane %v268, 2
  %v334 = vsel %vm269, %v326, 0
  %v337 = vsel %vm269, %v327, 0
  %339 = vmatpush.msra.mxu0 0.0
  %340 = vmatpush.msra.mxu0 0.0
  %341 = vmatpush.msra.mxu0 0.0
  %342 = vmatpush.msra.mxu0 0.0
  %343 = vmatpush.msra.mxu0 0.0
  %344 = vmatpush.msra.mxu0 0.0
  %345 = vmatpush.msra.mxu0 0.0
  %346 = vmatpush.msra.mxu0 0.0
  %347 = vmatpush.msra.mxu0 0.0
  %348 = vmatpush.msra.mxu0 0.0
  %349 = vmatpush.msra.mxu0 0.0
  %350 = vmatpush.msra.mxu0 0.0
  %351 = vmatpush.msra.mxu0 %v331
  %352 = vmatpush.msra.mxu0 %v330
  %353 = vmatpush.msra.mxu0 %v329
  %354 = vmatpush.msra.mxu0 %v328
  %355 = vmatmul.f32.gmra.mxu0 %v334
  %v356 = vpop.f32.mrf.mxu0
  %v357 = vadd.f32 %v332, %v356
  %358 = vmatmul.f32.gmra.mxu0 %v337
  %v359 = vpop.f32.mrf.mxu0
  %v360 = vadd.f32 %v332, %v359
  %361 = vdwg.mxu0
  %364 = vrot.lane.b32.xlu0 %v357, 96
  %v365 = vpop.permute.xlu0 %364
  %366 = vrot.lane.b32.xlu0 %v360, 96
  %v367 = vpop.permute.xlu0 %366
  %vm368 = vcmask 64512
  %v369 = vsel %vm368, %v357, 0
  %v371 = vsel %vm368, %v360, 0
  %v373 = vsel %vm368, %v365, 0
  %v375 = vsel %vm368, %v367, 0
  %377 = vmatpush.xpose.msra.mxu0 0.0
  %378 = vmatpush.xpose.msra.mxu0 0.0
  %379 = vmatpush.xpose.msra.mxu0 0.0
  %380 = vmatpush.xpose.msra.mxu0 0.0
  %381 = vmatpush.xpose.msra.mxu0 0.0
  %382 = vmatpush.xpose.msra.mxu0 0.0
  %383 = vmatpush.xpose.msra.mxu0 0.0
  %384 = vmatpush.xpose.msra.mxu0 0.0
  %385 = vmatpush.xpose.msra.mxu0 0.0
  %386 = vmatpush.xpose.msra.mxu0 0.0
  %387 = vmatpush.xpose.msra.mxu0 0.0
  %388 = vmatpush.xpose.msra.mxu0 0.0
  %389 = vmatpush.xpose.msra.mxu0 0.0
  %390 = vmatpush.xpose.msra.mxu0 0.0
  %391 = vmatpush.xpose.msra.mxu0 %v375
  %392 = vmatpush.xpose.msra.mxu0 %v373
  %393 = vmatmul.f32.gmra.mxu0 %v369
  %v394 = vpop.f32.mrf.mxu0
  %v395 = vadd.f32 0.0, %v394
  %396 = vmatmul.f32.gmra.mxu0 %v371
  %v397 = vpop.f32.mrf.mxu0
  %v398 = vadd.f32 0.0, %v397
  %399 = vdwg.mxu0
  %v400 = vmul.f32 %v395, 0.35355338
  %v401 = vmul.f32 %v398, 0.35355338
  %v402 = vadd.f32 %v400, %v37
  %v403 = vadd.f32 %v401, %v38
  %vm404 = vcmask 80896
  %v405 = vsel %vm404, %v402, -inf
  %406 = vmax.xlane.f32.xlu0 %v405
  %v407 = vpop.xlane.xlu0 %406
  %vm408 = vcmask 74752
  %v409 = vsel %vm408, %v403, -inf
  %410 = vmax.xlane.f32.xlu0 %v409
  %v411 = vpop.xlane.xlu0 %410
  %v412 = vsub.f32 %v402, %v407
  %v413 = vsub.f32 %v403, %v411
  %v414 = vmul.f32 %v412, 1.442695
  %v415 = vpow.pop %v414
  %v416 = vmul.f32 %v413, 1.442695
  %v417 = vpow.pop %v416
  %v418 = vsel %vm404, %v415, 0.0
  %419 = vadd.xlane.f32.xlu0 %v418
  %v420 = vpop.xlane.xlu0 %419
  %v421 = vsel %vm408, %v417, 0.0
  %422 = vadd.xlane.f32.xlu0 %v421
  %v423 = vpop.xlane.xlu0 %422
  %v424 = vrcp.pop %v420
  %v425 = vrcp.pop %v423
  %v426 = vmul.f32 %v415, %v424
  %v427 = vmul.f32 %v417, %v425
  %428 = vrot.lane.b32.xlu0 %v357, 64
  %v429 = vpop.permute.xlu0 %428
  %430 = vrot.lane.b32.xlu0 %v360, 64
  %v431 = vpop.permute.xlu0 %430
  %v434 = vsel %vm404, %v426, 0
  %v437 = vsel %vm404, %v427, 0
  %v439 = vsel %vm264, %v431, 0
  %441 = vmatpush.msra.mxu0 0.0
  %442 = vmatpush.msra.mxu0 0.0
  %443 = vmatpush.msra.mxu0 0.0
  %444 = vmatpush.msra.mxu0 0.0
  %445 = vmatpush.msra.mxu0 0.0
  %446 = vmatpush.msra.mxu0 0.0
  %447 = vmatpush.msra.mxu0 0.0
  %448 = vmatpush.msra.mxu0 0.0
  %449 = vmatpush.msra.mxu0 0.0
  %450 = vmatpush.msra.mxu0 0.0
  %451 = vmatpush.msra.mxu0 0.0
  %452 = vmatpush.msra.mxu0 0.0
  %453 = vmatpush.msra.mxu0 0.0
  %454 = vmatpush.msra.mxu0 0.0
  %455 = vmatpush.msra.mxu0 %v439
  %456 = vmatpush.msra.mxu0 %v429
  %457 = vmatmul.f32.gmra.mxu0 %v434
  %v458 = vpop.f32.mrf.mxu0
  %v459 = vadd.f32 0.0, %v458
  %460 = vmatmul.f32.gmra.mxu0 %v437
  %v461 = vpop.f32.mrf.mxu0
  %v462 = vadd.f32 0.0, %v461
  %463 = vdwg.mxu0
  %464 = vrot.lane.b32.xlu0 %v357, 120
  %v465 = vpop.permute.xlu0 %464
  %466 = vrot.lane.b32.xlu0 %v360, 120
  %v467 = vpop.permute.xlu0 %466
  %468 = vrot.lane.b32.xlu0 %v357, 88
  %v469 = vpop.permute.xlu0 %468
  %470 = vrot.lane.b32.xlu0 %v360, 88
  %v471 = vpop.permute.xlu0 %470
  %v472 = vsel %vm368, %v465, 0
  %v474 = vsel %vm368, %v467, 0
  %v476 = vsel %vm368, %v469, 0
  %v478 = vsel %vm368, %v471, 0
  %480 = vmatpush.xpose.msra.mxu0 0.0
  %481 = vmatpush.xpose.msra.mxu0 0.0
  %482 = vmatpush.xpose.msra.mxu0 0.0
  %483 = vmatpush.xpose.msra.mxu0 0.0
  %484 = vmatpush.xpose.msra.mxu0 0.0
  %485 = vmatpush.xpose.msra.mxu0 0.0
  %486 = vmatpush.xpose.msra.mxu0 0.0
  %487 = vmatpush.xpose.msra.mxu0 0.0
  %488 = vmatpush.xpose.msra.mxu0 0.0
  %489 = vmatpush.xpose.msra.mxu0 0.0
  %490 = vmatpush.xpose.msra.mxu0 0.0
  %491 = vmatpush.xpose.msra.mxu0 0.0
  %492 = vmatpush.xpose.msra.mxu0 0.0
  %493 = vmatpush.xpose.msra.mxu0 0.0
  %494 = vmatpush.xpose.msra.mxu0 %v478
  %495 = vmatpush.xpose.msra.mxu0 %v476
  %496 = vmatmul.f32.gmra.mxu0 %v472
  %v497 = vpop.f32.mrf.mxu0
  %v498 = vadd.f32 0.0, %v497
  %499 = vmatmul.f32.gmra.mxu0 %v474
  %v500 = vpop.f32.mrf.mxu0
  %v501 = vadd.f32 0.0, %v500
  %502 = vdwg.mxu0
  %v503 = vmul.f32 %v498, 0.35355338
  %v504 = vmul.f32 %v501, 0.35355338
  %v505 = vadd.f32 %v503, %v37
  %v506 = vadd.f32 %v504, %v38
  %v507 = vsel %vm404, %v505, -inf
  %508 = vmax.xlane.f32.xlu0 %v507
  %v509 = vpop.xlane.xlu0 %508
  %v510 = vsel %vm408, %v506, -inf
  %511 = vmax.xlane.f32.xlu0 %v510
  %v512 = vpop.xlane.xlu0 %511
  %v513 = vsub.f32 %v505, %v509
  %v514 = vsub.f32 %v506, %v512
  %v515 = vmul.f32 %v513, 1.442695
  %v516 = vpow.pop %v515
  %v517 = vmul.f32 %v514, 1.442695
  %v518 = vpow.pop %v517
  %v519 = vsel %vm404, %v516, 0.0
  %520 = vadd.xlane.f32.xlu0 %v519
  %v521 = vpop.xlane.xlu0 %520
  %v522 = vsel %vm408, %v518, 0.0
  %523 = vadd.xlane.f32.xlu0 %v522
  %v524 = vpop.xlane.xlu0 %523
  %v525 = vrcp.pop %v521
  %v526 = vrcp.pop %v524
  %v527 = vmul.f32 %v516, %v525
  %v528 = vmul.f32 %v518, %v526
  %529 = vrot.lane.b32.xlu0 %v357, 56
  %v530 = vpop.permute.xlu0 %529
  %531 = vrot.lane.b32.xlu0 %v360, 56
  %v532 = vpop.permute.xlu0 %531
  %v535 = vsel %vm404, %v527, 0
  %v538 = vsel %vm404, %v528, 0
  %v540 = vsel %vm264, %v532, 0
  %542 = vmatpush.msra.mxu0 0.0
  %543 = vmatpush.msra.mxu0 0.0
  %544 = vmatpush.msra.mxu0 0.0
  %545 = vmatpush.msra.mxu0 0.0
  %546 = vmatpush.msra.mxu0 0.0
  %547 = vmatpush.msra.mxu0 0.0
  %548 = vmatpush.msra.mxu0 0.0
  %549 = vmatpush.msra.mxu0 0.0
  %550 = vmatpush.msra.mxu0 0.0
  %551 = vmatpush.msra.mxu0 0.0
  %552 = vmatpush.msra.mxu0 0.0
  %553 = vmatpush.msra.mxu0 0.0
  %554 = vmatpush.msra.mxu0 0.0
  %555 = vmatpush.msra.mxu0 0.0
  %556 = vmatpush.msra.mxu0 %v540
  %557 = vmatpush.msra.mxu0 %v530
  %558 = vmatmul.f32.gmra.mxu0 %v535
  %v559 = vpop.f32.mrf.mxu0
  %v560 = vadd.f32 0.0, %v559
  %561 = vmatmul.f32.gmra.mxu0 %v538
  %v562 = vpop.f32.mrf.mxu0
  %v563 = vadd.f32 0.0, %v562
  %564 = vdwg.mxu0
  %565 = vrot.lane.b32.xlu0 %v357, 112
  %v566 = vpop.permute.xlu0 %565
  %567 = vrot.lane.b32.xlu0 %v360, 112
  %v568 = vpop.permute.xlu0 %567
  %569 = vrot.lane.b32.xlu0 %v357, 80
  %v570 = vpop.permute.xlu0 %569
  %571 = vrot.lane.b32.xlu0 %v360, 80
  %v572 = vpop.permute.xlu0 %571
  %v573 = vsel %vm368, %v566, 0
  %v575 = vsel %vm368, %v568, 0
  %v577 = vsel %vm368, %v570, 0
  %v579 = vsel %vm368, %v572, 0
  %581 = vmatpush.xpose.msra.mxu0 0.0
  %582 = vmatpush.xpose.msra.mxu0 0.0
  %583 = vmatpush.xpose.msra.mxu0 0.0
  %584 = vmatpush.xpose.msra.mxu0 0.0
  %585 = vmatpush.xpose.msra.mxu0 0.0
  %586 = vmatpush.xpose.msra.mxu0 0.0
  %587 = vmatpush.xpose.msra.mxu0 0.0
  %588 = vmatpush.xpose.msra.mxu0 0.0
  %589 = vmatpush.xpose.msra.mxu0 0.0
  %590 = vmatpush.xpose.msra.mxu0 0.0
  %591 = vmatpush.xpose.msra.mxu0 0.0
  %592 = vmatpush.xpose.msra.mxu0 0.0
  %593 = vmatpush.xpose.msra.mxu0 0.0
  %594 = vmatpush.xpose.msra.mxu0 0.0
  %595 = vmatpush.xpose.msra.mxu0 %v579
  %596 = vmatpush.xpose.msra.mxu0 %v577
  %597 = vmatmul.f32.gmra.mxu0 %v573
  %v598 = vpop.f32.mrf.mxu0
  %v599 = vadd.f32 0.0, %v598
  %600 = vmatmul.f32.gmra.mxu0 %v575
  %v601 = vpop.f32.mrf.mxu0
  %v602 = vadd.f32 0.0, %v601
  %603 = vdwg.mxu0
  %v604 = vmul.f32 %v599, 0.35355338
  %v605 = vmul.f32 %v602, 0.35355338
  %v606 = vadd.f32 %v604, %v37
  %v607 = vadd.f32 %v605, %v38
  %v608 = vsel %vm404, %v606, -inf
  %609 = vmax.xlane.f32.xlu0 %v608
  %v610 = vpop.xlane.xlu0 %609
  %v611 = vsel %vm408, %v607, -inf
  %612 = vmax.xlane.f32.xlu0 %v611
  %v613 = vpop.xlane.xlu0 %612
  %v614 = vsub.f32 %v606, %v610
  %v615 = vsub.f32 %v607, %v613
  %v616 = vmul.f32 %v614, 1.442695
  %v617 = vpow.pop %v616
  %v618 = vmul.f32 %v615, 1.442695
  %v619 = vpow.pop %v618
  %v620 = vsel %vm404, %v617, 0.0
  %621 = vadd.xlane.f32.xlu0 %v620
  %v622 = vpop.xlane.xlu0 %621
  %v623 = vsel %vm408, %v619, 0.0
  %624 = vadd.xlane.f32.xlu0 %v623
  %v625 = vpop.xlane.xlu0 %624
  %v626 = vrcp.pop %v622
  %v627 = vrcp.pop %v625
  %v628 = vmul.f32 %v617, %v626
  %v629 = vmul.f32 %v619, %v627
  %630 = vrot.lane.b32.xlu0 %v357, 48
  %v631 = vpop.permute.xlu0 %630
  %632 = vrot.lane.b32.xlu0 %v360, 48
  %v633 = vpop.permute.xlu0 %632
  %v636 = vsel %vm404, %v628, 0
  %v639 = vsel %vm404, %v629, 0
  %v641 = vsel %vm264, %v633, 0
  %643 = vmatpush.msra.mxu0 0.0
  %644 = vmatpush.msra.mxu0 0.0
  %645 = vmatpush.msra.mxu0 0.0
  %646 = vmatpush.msra.mxu0 0.0
  %647 = vmatpush.msra.mxu0 0.0
  %648 = vmatpush.msra.mxu0 0.0
  %649 = vmatpush.msra.mxu0 0.0
  %650 = vmatpush.msra.mxu0 0.0
  %651 = vmatpush.msra.mxu0 0.0
  %652 = vmatpush.msra.mxu0 0.0
  %653 = vmatpush.msra.mxu0 0.0
  %654 = vmatpush.msra.mxu0 0.0
  %655 = vmatpush.msra.mxu0 0.0
  %656 = vmatpush.msra.mxu0 0.0
  %657 = vmatpush.msra.mxu0 %v641
  %658 = vmatpush.msra.mxu0 %v631
  %659 = vmatmul.f32.gmra.mxu0 %v636
  %v660 = vpop.f32.mrf.mxu0
  %v661 = vadd.f32 0.0, %v660
  %662 = vmatmul.f32.gmra.mxu0 %v639
  %v663 = vpop.f32.mrf.mxu0
  %v664 = vadd.f32 0.0, %v663
  %665 = vdwg.mxu0
  %666 = vrot.lane.b32.xlu0 %v357, 104
  %v667 = vpop.permute.xlu0 %666
  %668 = vrot.lane.b32.xlu0 %v360, 104
  %v669 = vpop.permute.xlu0 %668
  %670 = vrot.lane.b32.xlu0 %v357, 72
  %v671 = vpop.permute.xlu0 %670
  %672 = vrot.lane.b32.xlu0 %v360, 72
  %v673 = vpop.permute.xlu0 %672
  %v674 = vsel %vm368, %v667, 0
  %v676 = vsel %vm368, %v669, 0
  %v678 = vsel %vm368, %v671, 0
  %v680 = vsel %vm368, %v673, 0
  %682 = vmatpush.xpose.msra.mxu0 0.0
  %683 = vmatpush.xpose.msra.mxu0 0.0
  %684 = vmatpush.xpose.msra.mxu0 0.0
  %685 = vmatpush.xpose.msra.mxu0 0.0
  %686 = vmatpush.xpose.msra.mxu0 0.0
  %687 = vmatpush.xpose.msra.mxu0 0.0
  %688 = vmatpush.xpose.msra.mxu0 0.0
  %689 = vmatpush.xpose.msra.mxu0 0.0
  %690 = vmatpush.xpose.msra.mxu0 0.0
  %691 = vmatpush.xpose.msra.mxu0 0.0
  %692 = vmatpush.xpose.msra.mxu0 0.0
  %693 = vmatpush.xpose.msra.mxu0 0.0
  %694 = vmatpush.xpose.msra.mxu0 0.0
  %695 = vmatpush.xpose.msra.mxu0 0.0
  %696 = vmatpush.xpose.msra.mxu0 %v680
  %697 = vmatpush.xpose.msra.mxu0 %v678
  %698 = vmatmul.f32.gmra.mxu0 %v674
  %v699 = vpop.f32.mrf.mxu0
  %v700 = vadd.f32 0.0, %v699
  %701 = vmatmul.f32.gmra.mxu0 %v676
  %v702 = vpop.f32.mrf.mxu0
  %v703 = vadd.f32 0.0, %v702
  %704 = vdwg.mxu0
  %v705 = vmul.f32 %v700, 0.35355338
  %v706 = vmul.f32 %v703, 0.35355338
  %v707 = vadd.f32 %v705, %v37
  %v708 = vadd.f32 %v706, %v38
  %v709 = vsel %vm404, %v707, -inf
  %710 = vmax.xlane.f32.xlu0 %v709
  %v711 = vpop.xlane.xlu0 %710
  %v712 = vsel %vm408, %v708, -inf
  %713 = vmax.xlane.f32.xlu0 %v712
  %v714 = vpop.xlane.xlu0 %713
  %v715 = vsub.f32 %v707, %v711
  %v716 = vsub.f32 %v708, %v714
  %v717 = vmul.f32 %v715, 1.442695
  %v718 = vpow.pop %v717
  %v719 = vmul.f32 %v716, 1.442695
  %v720 = vpow.pop %v719
  %v721 = vsel %vm404, %v718, 0.0
  %722 = vadd.xlane.f32.xlu0 %v721
  %v723 = vpop.xlane.xlu0 %722
  %v724 = vsel %vm408, %v720, 0.0
  %725 = vadd.xlane.f32.xlu0 %v724
  %v726 = vpop.xlane.xlu0 %725
  %v727 = vrcp.pop %v723
  %v728 = vrcp.pop %v726
  %v729 = vmul.f32 %v718, %v727
  %v730 = vmul.f32 %v720, %v728
  %731 = vrot.lane.b32.xlu0 %v357, 40
  %v732 = vpop.permute.xlu0 %731
  %733 = vrot.lane.b32.xlu0 %v360, 40
  %v734 = vpop.permute.xlu0 %733
  %v737 = vsel %vm404, %v729, 0
  %v740 = vsel %vm404, %v730, 0
  %v742 = vsel %vm264, %v734, 0
  %744 = vmatpush.msra.mxu0 0.0
  %745 = vmatpush.msra.mxu0 0.0
  %746 = vmatpush.msra.mxu0 0.0
  %747 = vmatpush.msra.mxu0 0.0
  %748 = vmatpush.msra.mxu0 0.0
  %749 = vmatpush.msra.mxu0 0.0
  %750 = vmatpush.msra.mxu0 0.0
  %751 = vmatpush.msra.mxu0 0.0
  %752 = vmatpush.msra.mxu0 0.0
  %753 = vmatpush.msra.mxu0 0.0
  %754 = vmatpush.msra.mxu0 0.0
  %755 = vmatpush.msra.mxu0 0.0
  %756 = vmatpush.msra.mxu0 0.0
  %757 = vmatpush.msra.mxu0 0.0
  %758 = vmatpush.msra.mxu0 %v742
  %759 = vmatpush.msra.mxu0 %v732
  %760 = vmatmul.f32.gmra.mxu0 %v737
  %v761 = vpop.f32.mrf.mxu0
  %v762 = vadd.f32 0.0, %v761
  %763 = vmatmul.f32.gmra.mxu0 %v740
  %v764 = vpop.f32.mrf.mxu0
  %v765 = vadd.f32 0.0, %v764
  %766 = vdwg.mxu0
  %769 = vrot.lane.b32.xlu0 %v560, 8
  %v770 = vpop.permute.xlu0 %769
  %771 = vrot.lane.b32.xlu0 %v563, 8
  %v772 = vpop.permute.xlu0 %771
  %777 = vrot.lane.b32.xlu0 %v661, 16
  %v778 = vpop.permute.xlu0 %777
  %779 = vrot.lane.b32.xlu0 %v664, 16
  %v780 = vpop.permute.xlu0 %779
  %785 = vrot.lane.b32.xlu0 %v762, 24
  %v786 = vpop.permute.xlu0 %785
  %787 = vrot.lane.b32.xlu0 %v765, 24
  %v788 = vpop.permute.xlu0 %787
  %v791 = vsel %vm368, %v459, %v770
  %v792 = vsel %vm368, %v462, %v772
  %vm793 = vcmask 130048
  %v794 = vsel %vm793, %v791, %v778
  %v795 = vsel %vm793, %v792, %v780
  %vm796 = vcmask 195584
  %v797 = vsel %vm796, %v794, %v786
  %v798 = vsel %vm796, %v795, %v788
  %v799 = vld [vmem:[%s4] sm:$0xff]
  %v800 = vld [vmem:[%s4 + $0x8] sm:$0xff]
  %v801 = vld [vmem:[%s4 + $0x10] sm:$0xff]
  %v802 = vld [vmem:[%s4 + $0x18] sm:$0xff]
  %v804 = vsel %vm269, %v797, 0
  %v807 = vsel %vm269, %v798, 0
  %809 = vmatpush.msra.mxu0 0.0
  %810 = vmatpush.msra.mxu0 0.0
  %811 = vmatpush.msra.mxu0 0.0
  %812 = vmatpush.msra.mxu0 0.0
  %813 = vmatpush.msra.mxu0 0.0
  %814 = vmatpush.msra.mxu0 0.0
  %815 = vmatpush.msra.mxu0 0.0
  %816 = vmatpush.msra.mxu0 0.0
  %817 = vmatpush.msra.mxu0 0.0
  %818 = vmatpush.msra.mxu0 0.0
  %819 = vmatpush.msra.mxu0 0.0
  %820 = vmatpush.msra.mxu0 0.0
  %821 = vmatpush.msra.mxu0 %v802
  %822 = vmatpush.msra.mxu0 %v801
  %823 = vmatpush.msra.mxu0 %v800
  %824 = vmatpush.msra.mxu0 %v799
  %825 = vmatmul.f32.gmra.mxu0 %v804
  %v826 = vpop.f32.mrf.mxu0
  %v827 = vadd.f32 0.0, %v826
  %828 = vmatmul.f32.gmra.mxu0 %v807
  %v829 = vpop.f32.mrf.mxu0
  %v830 = vadd.f32 0.0, %v829
  %831 = vdwg.mxu0
  %v832 = vadd.f32 %v266, %v827
  %v833 = vadd.f32 %v267, %v830
  %v834 = vperm.slane %v268, 3
  %v835 = vadd.f32 %v832, %v834
  %v836 = vadd.f32 %v833, %v834
  %v837 = vsel %vm269, %v835, 0.0
  %838 = vadd.xlane.f32.xlu0 %v837
  %v839 = vpop.xlane.xlu0 %838
  %v840 = vsel %vm273, %v836, 0.0
  %841 = vadd.xlane.f32.xlu0 %v840
  %v842 = vpop.xlane.xlu0 %841
  %v843 = vmul.f32 %v839, %v283
  %v844 = vmul.f32 %v842, %v283
  %v845 = vsub.f32 %v835, %v843
  %v846 = vsub.f32 %v836, %v844
  %v847 = vmul.f32 %v845, %v845
  %v848 = vmul.f32 %v846, %v846
  %v849 = vsel %vm269, %v847, 0.0
  %850 = vadd.xlane.f32.xlu0 %v849
  %v851 = vpop.xlane.xlu0 %850
  %v852 = vsel %vm273, %v848, 0.0
  %853 = vadd.xlane.f32.xlu0 %v852
  %v854 = vpop.xlane.xlu0 %853
  %v855 = vmul.f32 %v851, %v283
  %v856 = vmul.f32 %v854, %v283
  %v857 = vadd.f32 %v855, 1e-06
  %v858 = vadd.f32 %v856, 1e-06
  %v859 = vrsqrt.pop %v857
  %v860 = vmul.f32 %v859, %v857
  %v861 = vmul.f32 %v860, %v859
  %v862 = vmul.f32 0.5, %v861
  %v863 = vsub.f32 1.5, %v862
  %v864 = vmul.f32 %v859, %v863
  %vm865 = vweird.f32 %v857
  %vm866 = vweird.f32 %v859
  %vm867 = vmor %vm865, %vm866
  %v868 = vsel %vm867, %v859, %v864
  %v869 = vrsqrt.pop %v858
  %v870 = vmul.f32 %v869, %v858
  %v871 = vmul.f32 %v870, %v869
  %v872 = vmul.f32 0.5, %v871
  %v873 = vsub.f32 1.5, %v872
  %v874 = vmul.f32 %v869, %v873
  %vm875 = vweird.f32 %v858
  %vm876 = vweird.f32 %v869
  %vm877 = vmor %vm875, %vm876
  %v878 = vsel %vm877, %v869, %v874
  %v879 = vmul.f32 %v845, %v868
  %v880 = vmul.f32 %v846, %v878
  %v881 = vperm.slane %v268, 4
  %v882 = vmul.f32 %v879, %v881
  %v883 = vmul.f32 %v880, %v881
  %v884 = vperm.slane %v268, 5
  %v885 = vadd.f32 %v882, %v884
  %v886 = vadd.f32 %v883, %v884
  %v887 = vld [vmem:[%s5] sm:$0xff]
  %v888 = vld [vmem:[%s5 + $0x8] sm:$0xff]
  %v889 = vld [vmem:[%s5 + $0x10] sm:$0xff]
  %v890 = vld [vmem:[%s5 + $0x18] sm:$0xff]
  %v891 = vperm.slane %v268, 6
  %v893 = vsel %vm269, %v885, 0
  %v896 = vsel %vm269, %v886, 0
  %898 = vmatpush.msra.mxu0 0.0
  %899 = vmatpush.msra.mxu0 0.0
  %900 = vmatpush.msra.mxu0 0.0
  %901 = vmatpush.msra.mxu0 0.0
  %902 = vmatpush.msra.mxu0 0.0
  %903 = vmatpush.msra.mxu0 0.0
  %904 = vmatpush.msra.mxu0 0.0
  %905 = vmatpush.msra.mxu0 0.0
  %906 = vmatpush.msra.mxu0 0.0
  %907 = vmatpush.msra.mxu0 0.0
  %908 = vmatpush.msra.mxu0 0.0
  %909 = vmatpush.msra.mxu0 0.0
  %910 = vmatpush.msra.mxu0 %v890
  %911 = vmatpush.msra.mxu0 %v889
  %912 = vmatpush.msra.mxu0 %v888
  %913 = vmatpush.msra.mxu0 %v887
  %914 = vmatmul.f32.gmra.mxu0 %v893
  %v915 = vpop.f32.mrf.mxu0
  %v916 = vadd.f32 %v891, %v915
  %917 = vmatmul.f32.gmra.mxu0 %v896
  %v918 = vpop.f32.mrf.mxu0
  %v919 = vadd.f32 %v891, %v918
  %920 = vdwg.mxu0
  %v921 = vmul.f32 %v916, 0.5
  %v922 = vmul.f32 %v919, 0.5
  %v923 = vmul.f32 %v916, 0.044715
  %v924 = vmul.f32 %v919, 0.044715
  %v925 = vmul.f32 %v923, %v916
  %v926 = vmul.f32 %v924, %v919
  %v927 = vmul.f32 %v925, %v916
  %v928 = vmul.f32 %v926, %v919
  %v929 = vadd.f32 %v916, %v927
  %v930 = vadd.f32 %v919, %v928
  %v931 = vmul.f32 %v929, 0.7978846
  %v932 = vmul.f32 %v930, 0.7978846
  %v933 = vtanh.pop %v931
  %v934 = vtanh.pop %v932
  %v935 = vadd.f32 %v933, 1.0
  %v936 = vadd.f32 %v934, 1.0
  %v937 = vmul.f32 %v921, %v935
  %v938 = vmul.f32 %v922, %v936
  %v939 = vld [vmem:[%s6] sm:$0xff]
  %v940 = vld [vmem:[%s6 + $0x8] sm:$0xff]
  %v941 = vld [vmem:[%s6 + $0x10] sm:$0xff]
  %v942 = vld [vmem:[%s6 + $0x18] sm:$0xff]
  %v943 = vld [vmem:[%s6 + $0x20] sm:$0xff]
  %v944 = vld [vmem:[%s6 + $0x28] sm:$0xff]
  %v945 = vld [vmem:[%s6 + $0x30] sm:$0xff]
  %v946 = vld [vmem:[%s6 + $0x38] sm:$0xff]
  %v947 = vld [vmem:[%s6 + $0x40] sm:$0xff]
  %v948 = vld [vmem:[%s6 + $0x48] sm:$0xff]
  %v949 = vld [vmem:[%s6 + $0x50] sm:$0xff]
  %v950 = vld [vmem:[%s6 + $0x58] sm:$0xff]
  %v951 = vld [vmem:[%s6 + $0x60] sm:$0xff]
  %v952 = vld [vmem:[%s6 + $0x68] sm:$0xff]
  %v953 = vld [vmem:[%s6 + $0x70] sm:$0xff]
  %v954 = vld [vmem:[%s6 + $0x78] sm:$0xff]
  %955 = vmatpush.msra.mxu0 %v954
  %956 = vmatpush.msra.mxu0 %v953
  %957 = vmatpush.msra.mxu0 %v952
  %958 = vmatpush.msra.mxu0 %v951
  %959 = vmatpush.msra.mxu0 %v950
  %960 = vmatpush.msra.mxu0 %v949
  %961 = vmatpush.msra.mxu0 %v948
  %962 = vmatpush.msra.mxu0 %v947
  %963 = vmatpush.msra.mxu0 %v946
  %964 = vmatpush.msra.mxu0 %v945
  %965 = vmatpush.msra.mxu0 %v944
  %966 = vmatpush.msra.mxu0 %v943
  %967 = vmatpush.msra.mxu0 %v942
  %968 = vmatpush.msra.mxu0 %v941
  %969 = vmatpush.msra.mxu0 %v940
  %970 = vmatpush.msra.mxu0 %v939
  %971 = vmatmul.f32.gmra.mxu0 %v937
  %v972 = vpop.f32.mrf.mxu0
  %v973 = vadd.f32 0.0, %v972
  %974 = vmatmul.f32.gmra.mxu0 %v938
  %v975 = vpop.f32.mrf.mxu0
  %v976 = vadd.f32 0.0, %v975
  %977 = vdwg.mxu0
  %v978 = vadd.f32 %v835, %v973
  %v979 = vadd.f32 %v836, %v976
  %v980 = vperm.slane %v268, 7
  %v981 = vadd.f32 %v978, %v980
  %v982 = vadd.f32 %v979, %v980
  %s983 = scalar_lea.vmem %s7, 8
  %v984 = vld [vmem:[%s983] sm:$0xff]
  %v985 = vsel %vm269, %v981, 0.0
  %986 = vadd.xlane.f32.xlu0 %v985
  %v987 = vpop.xlane.xlu0 %986
  %v988 = vsel %vm273, %v982, 0.0
  %989 = vadd.xlane.f32.xlu0 %v988
  %v990 = vpop.xlane.xlu0 %989
  %v991 = vmul.f32 %v987, %v283
  %v992 = vmul.f32 %v990, %v283
  %v993 = vsub.f32 %v981, %v991
  %v994 = vsub.f32 %v982, %v992
  %v995 = vmul.f32 %v993, %v993
  %v996 = vmul.f32 %v994, %v994
  %v997 = vsel %vm269, %v995, 0.0
  %998 = vadd.xlane.f32.xlu0 %v997
  %v999 = vpop.xlane.xlu0 %998
  %v1000 = vsel %vm273, %v996, 0.0
  %1001 = vadd.xlane.f32.xlu0 %v1000
  %v1002 = vpop.xlane.xlu0 %1001
  %v1003 = vmul.f32 %v999, %v283
  %v1004 = vmul.f32 %v1002, %v283
  %v1005 = vadd.f32 %v1003, 1e-06
  %v1006 = vadd.f32 %v1004, 1e-06
  %v1007 = vrsqrt.pop %v1005
  %v1008 = vmul.f32 %v1007, %v1005
  %v1009 = vmul.f32 %v1008, %v1007
  %v1010 = vmul.f32 0.5, %v1009
  %v1011 = vsub.f32 1.5, %v1010
  %v1012 = vmul.f32 %v1007, %v1011
  %vm1013 = vweird.f32 %v1005
  %vm1014 = vweird.f32 %v1007
  %vm1015 = vmor %vm1013, %vm1014
  %v1016 = vsel %vm1015, %v1007, %v1012
  %v1017 = vrsqrt.pop %v1006
  %v1018 = vmul.f32 %v1017, %v1006
  %v1019 = vmul.f32 %v1018, %v1017
  %v1020 = vmul.f32 0.5, %v1019
  %v1021 = vsub.f32 1.5, %v1020
  %v1022 = vmul.f32 %v1017, %v1021
  %vm1023 = vweird.f32 %v1006
  %vm1024 = vweird.f32 %v1017
  %vm1025 = vmor %vm1023, %vm1024
  %v1026 = vsel %vm1025, %v1017, %v1022
  %v1027 = vmul.f32 %v993, %v1016
  %v1028 = vmul.f32 %v994, %v1026
  %v1029 = vperm.slane %v984, 0
  %v1030 = vmul.f32 %v1027, %v1029
  %v1031 = vmul.f32 %v1028, %v1029
  %v1032 = vperm.slane %v984, 1
  %v1033 = vadd.f32 %v1030, %v1032
  %v1034 = vadd.f32 %v1031, %v1032
  %s1035 = scalar_lea.vmem %s3, 32
  %v1036 = vld [vmem:[%s1035] sm:$0xff]
  %v1037 = vld [vmem:[%s1035 + $0x8] sm:$0xff]
  %v1038 = vld [vmem:[%s1035 + $0x10] sm:$0xff]
  %v1039 = vld [vmem:[%s1035 + $0x18] sm:$0xff]
  %v1040 = vperm.slane %v984, 2
  %v1042 = vsel %vm269, %v1033, 0
  %v1045 = vsel %vm269, %v1034, 0
  %1047 = vmatpush.msra.mxu0 0.0
  %1048 = vmatpush.msra.mxu0 0.0
  %1049 = vmatpush.msra.mxu0 0.0
  %1050 = vmatpush.msra.mxu0 0.0
  %1051 = vmatpush.msra.mxu0 0.0
  %1052 = vmatpush.msra.mxu0 0.0
  %1053 = vmatpush.msra.mxu0 0.0
  %1054 = vmatpush.msra.mxu0 0.0
  %1055 = vmatpush.msra.mxu0 0.0
  %1056 = vmatpush.msra.mxu0 0.0
  %1057 = vmatpush.msra.mxu0 0.0
  %1058 = vmatpush.msra.mxu0 0.0
  %1059 = vmatpush.msra.mxu0 %v1039
  %1060 = vmatpush.msra.mxu0 %v1038
  %1061 = vmatpush.msra.mxu0 %v1037
  %1062 = vmatpush.msra.mxu0 %v1036
  %1063 = vmatmul.f32.gmra.mxu0 %v1042
  %v1064 = vpop.f32.mrf.mxu0
  %v1065 = vadd.f32 %v1040, %v1064
  %1066 = vmatmul.f32.gmra.mxu0 %v1045
  %v1067 = vpop.f32.mrf.mxu0
  %v1068 = vadd.f32 %v1040, %v1067
  %1069 = vdwg.mxu0
  %1072 = vrot.lane.b32.xlu0 %v1065, 96
  %v1073 = vpop.permute.xlu0 %1072
  %1074 = vrot.lane.b32.xlu0 %v1068, 96
  %v1075 = vpop.permute.xlu0 %1074
  %v1076 = vsel %vm368, %v1065, 0
  %v1078 = vsel %vm368, %v1068, 0
  %v1080 = vsel %vm368, %v1073, 0
  %v1082 = vsel %vm368, %v1075, 0
  %1084 = vmatpush.xpose.msra.mxu0 0.0
  %1085 = vmatpush.xpose.msra.mxu0 0.0
  %1086 = vmatpush.xpose.msra.mxu0 0.0
  %1087 = vmatpush.xpose.msra.mxu0 0.0
  %1088 = vmatpush.xpose.msra.mxu0 0.0
  %1089 = vmatpush.xpose.msra.mxu0 0.0
  %1090 = vmatpush.xpose.msra.mxu0 0.0
  %1091 = vmatpush.xpose.msra.mxu0 0.0
  %1092 = vmatpush.xpose.msra.mxu0 0.0
  %1093 = vmatpush.xpose.msra.mxu0 0.0
  %1094 = vmatpush.xpose.msra.mxu0 0.0
  %1095 = vmatpush.xpose.msra.mxu0 0.0
  %1096 = vmatpush.xpose.msra.mxu0 0.0
  %1097 = vmatpush.xpose.msra.mxu0 0.0
  %1098 = vmatpush.xpose.msra.mxu0 %v1082
  %1099 = vmatpush.xpose.msra.mxu0 %v1080
  %1100 = vmatmul.f32.gmra.mxu0 %v1076
  %v1101 = vpop.f32.mrf.mxu0
  %v1102 = vadd.f32 0.0, %v1101
  %1103 = vmatmul.f32.gmra.mxu0 %v1078
  %v1104 = vpop.f32.mrf.mxu0
  %v1105 = vadd.f32 0.0, %v1104
  %1106 = vdwg.mxu0
  %v1107 = vmul.f32 %v1102, 0.35355338
  %v1108 = vmul.f32 %v1105, 0.35355338
  %v1109 = vadd.f32 %v1107, %v37
  %v1110 = vadd.f32 %v1108, %v38
  %v1111 = vsel %vm404, %v1109, -inf
  %1112 = vmax.xlane.f32.xlu0 %v1111
  %v1113 = vpop.xlane.xlu0 %1112
  %v1114 = vsel %vm408, %v1110, -inf
  %1115 = vmax.xlane.f32.xlu0 %v1114
  %v1116 = vpop.xlane.xlu0 %1115
  %v1117 = vsub.f32 %v1109, %v1113
  %v1118 = vsub.f32 %v1110, %v1116
  %v1119 = vmul.f32 %v1117, 1.442695
  %v1120 = vpow.pop %v1119
  %v1121 = vmul.f32 %v1118, 1.442695
  %v1122 = vpow.pop %v1121
  %v1123 = vsel %vm404, %v1120, 0.0
  %1124 = vadd.xlane.f32.xlu0 %v1123
  %v1125 = vpop.xlane.xlu0 %1124
  %v1126 = vsel %vm408, %v1122, 0.0
  %1127 = vadd.xlane.f32.xlu0 %v1126
  %v1128 = vpop.xlane.xlu0 %1127
  %v1129 = vrcp.pop %v1125
  %v1130 = vrcp.pop %v1128
  %v1131 = vmul.f32 %v1120, %v1129
  %v1132 = vmul.f32 %v1122, %v1130
  %1133 = vrot.lane.b32.xlu0 %v1065, 64
  %v1134 = vpop.permute.xlu0 %1133
  %1135 = vrot.lane.b32.xlu0 %v1068, 64
  %v1136 = vpop.permute.xlu0 %1135
  %v1139 = vsel %vm404, %v1131, 0
  %v1142 = vsel %vm404, %v1132, 0
  %v1144 = vsel %vm264, %v1136, 0
  %1146 = vmatpush.msra.mxu0 0.0
  %1147 = vmatpush.msra.mxu0 0.0
  %1148 = vmatpush.msra.mxu0 0.0
  %1149 = vmatpush.msra.mxu0 0.0
  %1150 = vmatpush.msra.mxu0 0.0
  %1151 = vmatpush.msra.mxu0 0.0
  %1152 = vmatpush.msra.mxu0 0.0
  %1153 = vmatpush.msra.mxu0 0.0
  %1154 = vmatpush.msra.mxu0 0.0
  %1155 = vmatpush.msra.mxu0 0.0
  %1156 = vmatpush.msra.mxu0 0.0
  %1157 = vmatpush.msra.mxu0 0.0
  %1158 = vmatpush.msra.mxu0 0.0
  %1159 = vmatpush.msra.mxu0 0.0
  %1160 = vmatpush.msra.mxu0 %v1144
  %1161 = vmatpush.msra.mxu0 %v1134
  %1162 = vmatmul.f32.gmra.mxu0 %v1139
  %v1163 = vpop.f32.mrf.mxu0
  %v1164 = vadd.f32 0.0, %v1163
  %1165 = vmatmul.f32.gmra.mxu0 %v1142
  %v1166 = vpop.f32.mrf.mxu0
  %v1167 = vadd.f32 0.0, %v1166
  %1168 = vdwg.mxu0
  %1169 = vrot.lane.b32.xlu0 %v1065, 120
  %v1170 = vpop.permute.xlu0 %1169
  %1171 = vrot.lane.b32.xlu0 %v1068, 120
  %v1172 = vpop.permute.xlu0 %1171
  %1173 = vrot.lane.b32.xlu0 %v1065, 88
  %v1174 = vpop.permute.xlu0 %1173
  %1175 = vrot.lane.b32.xlu0 %v1068, 88
  %v1176 = vpop.permute.xlu0 %1175
  %v1177 = vsel %vm368, %v1170, 0
  %v1179 = vsel %vm368, %v1172, 0
  %v1181 = vsel %vm368, %v1174, 0
  %v1183 = vsel %vm368, %v1176, 0
  %1185 = vmatpush.xpose.msra.mxu0 0.0
  %1186 = vmatpush.xpose.msra.mxu0 0.0
  %1187 = vmatpush.xpose.msra.mxu0 0.0
  %1188 = vmatpush.xpose.msra.mxu0 0.0
  %1189 = vmatpush.xpose.msra.mxu0 0.0
  %1190 = vmatpush.xpose.msra.mxu0 0.0
  %1191 = vmatpush.xpose.msra.mxu0 0.0
  %1192 = vmatpush.xpose.msra.mxu0 0.0
  %1193 = vmatpush.xpose.msra.mxu0 0.0
  %1194 = vmatpush.xpose.msra.mxu0 0.0
  %1195 = vmatpush.xpose.msra.mxu0 0.0
  %1196 = vmatpush.xpose.msra.mxu0 0.0
  %1197 = vmatpush.xpose.msra.mxu0 0.0
  %1198 = vmatpush.xpose.msra.mxu0 0.0
  %1199 = vmatpush.xpose.msra.mxu0 %v1183
  %1200 = vmatpush.xpose.msra.mxu0 %v1181
  %1201 = vmatmul.f32.gmra.mxu0 %v1177
  %v1202 = vpop.f32.mrf.mxu0
  %v1203 = vadd.f32 0.0, %v1202
  %1204 = vmatmul.f32.gmra.mxu0 %v1179
  %v1205 = vpop.f32.mrf.mxu0
  %v1206 = vadd.f32 0.0, %v1205
  %1207 = vdwg.mxu0
  %v1208 = vmul.f32 %v1203, 0.35355338
  %v1209 = vmul.f32 %v1206, 0.35355338
  %v1210 = vadd.f32 %v1208, %v37
  %v1211 = vadd.f32 %v1209, %v38
  %v1212 = vsel %vm404, %v1210, -inf
  %1213 = vmax.xlane.f32.xlu0 %v1212
  %v1214 = vpop.xlane.xlu0 %1213
  %v1215 = vsel %vm408, %v1211, -inf
  %1216 = vmax.xlane.f32.xlu0 %v1215
  %v1217 = vpop.xlane.xlu0 %1216
  %v1218 = vsub.f32 %v1210, %v1214
  %v1219 = vsub.f32 %v1211, %v1217
  %v1220 = vmul.f32 %v1218, 1.442695
  %v1221 = vpow.pop %v1220
  %v1222 = vmul.f32 %v1219, 1.442695
  %v1223 = vpow.pop %v1222
  %v1224 = vsel %vm404, %v1221, 0.0
  %1225 = vadd.xlane.f32.xlu0 %v1224
  %v1226 = vpop.xlane.xlu0 %1225
  %v1227 = vsel %vm408, %v1223, 0.0
  %1228 = vadd.xlane.f32.xlu0 %v1227
  %v1229 = vpop.xlane.xlu0 %1228
  %v1230 = vrcp.pop %v1226
  %v1231 = vrcp.pop %v1229
  %v1232 = vmul.f32 %v1221, %v1230
  %v1233 = vmul.f32 %v1223, %v1231
  %1234 = vrot.lane.b32.xlu0 %v1065, 56
  %v1235 = vpop.permute.xlu0 %1234
  %1236 = vrot.lane.b32.xlu0 %v1068, 56
  %v1237 = vpop.permute.xlu0 %1236
  %v1240 = vsel %vm404, %v1232, 0
  %v1243 = vsel %vm404, %v1233, 0
  %v1245 = vsel %vm264, %v1237, 0
  %1247 = vmatpush.msra.mxu0 0.0
  %1248 = vmatpush.msra.mxu0 0.0
  %1249 = vmatpush.msra.mxu0 0.0
  %1250 = vmatpush.msra.mxu0 0.0
  %1251 = vmatpush.msra.mxu0 0.0
  %1252 = vmatpush.msra.mxu0 0.0
  %1253 = vmatpush.msra.mxu0 0.0
  %1254 = vmatpush.msra.mxu0 0.0
  %1255 = vmatpush.msra.mxu0 0.0
  %1256 = vmatpush.msra.mxu0 0.0
  %1257 = vmatpush.msra.mxu0 0.0
  %1258 = vmatpush.msra.mxu0 0.0
  %1259 = vmatpush.msra.mxu0 0.0
  %1260 = vmatpush.msra.mxu0 0.0
  %1261 = vmatpush.msra.mxu0 %v1245
  %1262 = vmatpush.msra.mxu0 %v1235
  %1263 = vmatmul.f32.gmra.mxu0 %v1240
  %v1264 = vpop.f32.mrf.mxu0
  %v1265 = vadd.f32 0.0, %v1264
  %1266 = vmatmul.f32.gmra.mxu0 %v1243
  %v1267 = vpop.f32.mrf.mxu0
  %v1268 = vadd.f32 0.0, %v1267
  %1269 = vdwg.mxu0
  %1270 = vrot.lane.b32.xlu0 %v1065, 112
  %v1271 = vpop.permute.xlu0 %1270
  %1272 = vrot.lane.b32.xlu0 %v1068, 112
  %v1273 = vpop.permute.xlu0 %1272
  %1274 = vrot.lane.b32.xlu0 %v1065, 80
  %v1275 = vpop.permute.xlu0 %1274
  %1276 = vrot.lane.b32.xlu0 %v1068, 80
  %v1277 = vpop.permute.xlu0 %1276
  %v1278 = vsel %vm368, %v1271, 0
  %v1280 = vsel %vm368, %v1273, 0
  %v1282 = vsel %vm368, %v1275, 0
  %v1284 = vsel %vm368, %v1277, 0
  %1286 = vmatpush.xpose.msra.mxu0 0.0
  %1287 = vmatpush.xpose.msra.mxu0 0.0
  %1288 = vmatpush.xpose.msra.mxu0 0.0
  %1289 = vmatpush.xpose.msra.mxu0 0.0
  %1290 = vmatpush.xpose.msra.mxu0 0.0
  %1291 = vmatpush.xpose.msra.mxu0 0.0
  %1292 = vmatpush.xpose.msra.mxu0 0.0
  %1293 = vmatpush.xpose.msra.mxu0 0.0
  %1294 = vmatpush.xpose.msra.mxu0 0.0
  %1295 = vmatpush.xpose.msra.mxu0 0.0
  %1296 = vmatpush.xpose.msra.mxu0 0.0
  %1297 = vmatpush.xpose.msra.mxu0 0.0
  %1298 = vmatpush.xpose.msra.mxu0 0.0
  %1299 = vmatpush.xpose.msra.mxu0 0.0
  %1300 = vmatpush.xpose.msra.mxu0 %v1284
  %1301 = vmatpush.xpose.msra.mxu0 %v1282
  %1302 = vmatmul.f32.gmra.mxu0 %v1278
  %v1303 = vpop.f32.mrf.mxu0
  %v1304 = vadd.f32 0.0, %v1303
  %1305 = vmatmul.f32.gmra.mxu0 %v1280
  %v1306 = vpop.f32.mrf.mxu0
  %v1307 = vadd.f32 0.0, %v1306
  %1308 = vdwg.mxu0
  %v1309 = vmul.f32 %v1304, 0.35355338
  %v1310 = vmul.f32 %v1307, 0.35355338
  %v1311 = vadd.f32 %v1309, %v37
  %v1312 = vadd.f32 %v1310, %v38
  %v1313 = vsel %vm404, %v1311, -inf
  %1314 = vmax.xlane.f32.xlu0 %v1313
  %v1315 = vpop.xlane.xlu0 %1314
  %v1316 = vsel %vm408, %v1312, -inf
  %1317 = vmax.xlane.f32.xlu0 %v1316
  %v1318 = vpop.xlane.xlu0 %1317
  %v1319 = vsub.f32 %v1311, %v1315
  %v1320 = vsub.f32 %v1312, %v1318
  %v1321 = vmul.f32 %v1319, 1.442695
  %v1322 = vpow.pop %v1321
  %v1323 = vmul.f32 %v1320, 1.442695
  %v1324 = vpow.pop %v1323
  %v1325 = vsel %vm404, %v1322, 0.0
  %1326 = vadd.xlane.f32.xlu0 %v1325
  %v1327 = vpop.xlane.xlu0 %1326
  %v1328 = vsel %vm408, %v1324, 0.0
  %1329 = vadd.xlane.f32.xlu0 %v1328
  %v1330 = vpop.xlane.xlu0 %1329
  %v1331 = vrcp.pop %v1327
  %v1332 = vrcp.pop %v1330
  %v1333 = vmul.f32 %v1322, %v1331
  %v1334 = vmul.f32 %v1324, %v1332
  %1335 = vrot.lane.b32.xlu0 %v1065, 48
  %v1336 = vpop.permute.xlu0 %1335
  %1337 = vrot.lane.b32.xlu0 %v1068, 48
  %v1338 = vpop.permute.xlu0 %1337
  %v1341 = vsel %vm404, %v1333, 0
  %v1344 = vsel %vm404, %v1334, 0
  %v1346 = vsel %vm264, %v1338, 0
  %1348 = vmatpush.msra.mxu0 0.0
  %1349 = vmatpush.msra.mxu0 0.0
  %1350 = vmatpush.msra.mxu0 0.0
  %1351 = vmatpush.msra.mxu0 0.0
  %1352 = vmatpush.msra.mxu0 0.0
  %1353 = vmatpush.msra.mxu0 0.0
  %1354 = vmatpush.msra.mxu0 0.0
  %1355 = vmatpush.msra.mxu0 0.0
  %1356 = vmatpush.msra.mxu0 0.0
  %1357 = vmatpush.msra.mxu0 0.0
  %1358 = vmatpush.msra.mxu0 0.0
  %1359 = vmatpush.msra.mxu0 0.0
  %1360 = vmatpush.msra.mxu0 0.0
  %1361 = vmatpush.msra.mxu0 0.0
  %1362 = vmatpush.msra.mxu0 %v1346
  %1363 = vmatpush.msra.mxu0 %v1336
  %1364 = vmatmul.f32.gmra.mxu0 %v1341
  %v1365 = vpop.f32.mrf.mxu0
  %v1366 = vadd.f32 0.0, %v1365
  %1367 = vmatmul.f32.gmra.mxu0 %v1344
  %v1368 = vpop.f32.mrf.mxu0
  %v1369 = vadd.f32 0.0, %v1368
  %1370 = vdwg.mxu0
  %1371 = vrot.lane.b32.xlu0 %v1065, 104
  %v1372 = vpop.permute.xlu0 %1371
  %1373 = vrot.lane.b32.xlu0 %v1068, 104
  %v1374 = vpop.permute.xlu0 %1373
  %1375 = vrot.lane.b32.xlu0 %v1065, 72
  %v1376 = vpop.permute.xlu0 %1375
  %1377 = vrot.lane.b32.xlu0 %v1068, 72
  %v1378 = vpop.permute.xlu0 %1377
  %v1379 = vsel %vm368, %v1372, 0
  %v1381 = vsel %vm368, %v1374, 0
  %v1383 = vsel %vm368, %v1376, 0
  %v1385 = vsel %vm368, %v1378, 0
  %1387 = vmatpush.xpose.msra.mxu0 0.0
  %1388 = vmatpush.xpose.msra.mxu0 0.0
  %1389 = vmatpush.xpose.msra.mxu0 0.0
  %1390 = vmatpush.xpose.msra.mxu0 0.0
  %1391 = vmatpush.xpose.msra.mxu0 0.0
  %1392 = vmatpush.xpose.msra.mxu0 0.0
  %1393 = vmatpush.xpose.msra.mxu0 0.0
  %1394 = vmatpush.xpose.msra.mxu0 0.0
  %1395 = vmatpush.xpose.msra.mxu0 0.0
  %1396 = vmatpush.xpose.msra.mxu0 0.0
  %1397 = vmatpush.xpose.msra.mxu0 0.0
  %1398 = vmatpush.xpose.msra.mxu0 0.0
  %1399 = vmatpush.xpose.msra.mxu0 0.0
  %1400 = vmatpush.xpose.msra.mxu0 0.0
  %1401 = vmatpush.xpose.msra.mxu0 %v1385
  %1402 = vmatpush.xpose.msra.mxu0 %v1383
  %1403 = vmatmul.f32.gmra.mxu0 %v1379
  %v1404 = vpop.f32.mrf.mxu0
  %v1405 = vadd.f32 0.0, %v1404
  %1406 = vmatmul.f32.gmra.mxu0 %v1381
  %v1407 = vpop.f32.mrf.mxu0
  %v1408 = vadd.f32 0.0, %v1407
  %1409 = vdwg.mxu0
  %v1410 = vmul.f32 %v1405, 0.35355338
  %v1411 = vmul.f32 %v1408, 0.35355338
  %v1412 = vadd.f32 %v1410, %v37
  %v1413 = vadd.f32 %v1411, %v38
  %v1414 = vsel %vm404, %v1412, -inf
  %1415 = vmax.xlane.f32.xlu0 %v1414
  %v1416 = vpop.xlane.xlu0 %1415
  %v1417 = vsel %vm408, %v1413, -inf
  %1418 = vmax.xlane.f32.xlu0 %v1417
  %v1419 = vpop.xlane.xlu0 %1418
  %v1420 = vsub.f32 %v1412, %v1416
  %v1421 = vsub.f32 %v1413, %v1419
  %v1422 = vmul.f32 %v1420, 1.442695
  %v1423 = vpow.pop %v1422
  %v1424 = vmul.f32 %v1421, 1.442695
  %v1425 = vpow.pop %v1424
  %v1426 = vsel %vm404, %v1423, 0.0
  %1427 = vadd.xlane.f32.xlu0 %v1426
  %v1428 = vpop.xlane.xlu0 %1427
  %v1429 = vsel %vm408, %v1425, 0.0
  %1430 = vadd.xlane.f32.xlu0 %v1429
  %v1431 = vpop.xlane.xlu0 %1430
  %v1432 = vrcp.pop %v1428
  %v1433 = vrcp.pop %v1431
  %v1434 = vmul.f32 %v1423, %v1432
  %v1435 = vmul.f32 %v1425, %v1433
  %1436 = vrot.lane.b32.xlu0 %v1065, 40
  %v1437 = vpop.permute.xlu0 %1436
  %1438 = vrot.lane.b32.xlu0 %v1068, 40
  %v1439 = vpop.permute.xlu0 %1438
  %v1442 = vsel %vm404, %v1434, 0
  %v1445 = vsel %vm404, %v1435, 0
  %v1447 = vsel %vm264, %v1439, 0
  %1449 = vmatpush.msra.mxu0 0.0
  %1450 = vmatpush.msra.mxu0 0.0
  %1451 = vmatpush.msra.mxu0 0.0
  %1452 = vmatpush.msra.mxu0 0.0
  %1453 = vmatpush.msra.mxu0 0.0
  %1454 = vmatpush.msra.mxu0 0.0
  %1455 = vmatpush.msra.mxu0 0.0
  %1456 = vmatpush.msra.mxu0 0.0
  %1457 = vmatpush.msra.mxu0 0.0
  %1458 = vmatpush.msra.mxu0 0.0
  %1459 = vmatpush.msra.mxu0 0.0
  %1460 = vmatpush.msra.mxu0 0.0
  %1461 = vmatpush.msra.mxu0 0.0
  %1462 = vmatpush.msra.mxu0 0.0
  %1463 = vmatpush.msra.mxu0 %v1447
  %1464 = vmatpush.msra.mxu0 %v1437
  %1465 = vmatmul.f32.gmra.mxu0 %v1442
  %v1466 = vpop.f32.mrf.mxu0
  %v1467 = vadd.f32 0.0, %v1466
  %1468 = vmatmul.f32.gmra.mxu0 %v1445
  %v1469 = vpop.f32.mrf.mxu0
  %v1470 = vadd.f32 0.0, %v1469
  %1471 = vdwg.mxu0
  %1474 = vrot.lane.b32.xlu0 %v1265, 8
  %v1475 = vpop.permute.xlu0 %1474
  %1476 = vrot.lane.b32.xlu0 %v1268, 8
  %v1477 = vpop.permute.xlu0 %1476
  %1482 = vrot.lane.b32.xlu0 %v1366, 16
  %v1483 = vpop.permute.xlu0 %1482
  %1484 = vrot.lane.b32.xlu0 %v1369, 16
  %v1485 = vpop.permute.xlu0 %1484
  %1490 = vrot.lane.b32.xlu0 %v1467, 24
  %v1491 = vpop.permute.xlu0 %1490
  %1492 = vrot.lane.b32.xlu0 %v1470, 24
  %v1493 = vpop.permute.xlu0 %1492
  %v1496 = vsel %vm368, %v1164, %v1475
  %v1497 = vsel %vm368, %v1167, %v1477
  %v1498 = vsel %vm793, %v1496, %v1483
  %v1499 = vsel %vm793, %v1497, %v1485
  %v1500 = vsel %vm796, %v1498, %v1491
  %v1501 = vsel %vm796, %v1499, %v1493
  %s1502 = scalar_lea.vmem %s4, 32
  %v1503 = vld [vmem:[%s1502] sm:$0xff]
  %v1504 = vld [vmem:[%s1502 + $0x8] sm:$0xff]
  %v1505 = vld [vmem:[%s1502 + $0x10] sm:$0xff]
  %v1506 = vld [vmem:[%s1502 + $0x18] sm:$0xff]
  %v1508 = vsel %vm269, %v1500, 0
  %v1511 = vsel %vm269, %v1501, 0
  %1513 = vmatpush.msra.mxu0 0.0
  %1514 = vmatpush.msra.mxu0 0.0
  %1515 = vmatpush.msra.mxu0 0.0
  %1516 = vmatpush.msra.mxu0 0.0
  %1517 = vmatpush.msra.mxu0 0.0
  %1518 = vmatpush.msra.mxu0 0.0
  %1519 = vmatpush.msra.mxu0 0.0
  %1520 = vmatpush.msra.mxu0 0.0
  %1521 = vmatpush.msra.mxu0 0.0
  %1522 = vmatpush.msra.mxu0 0.0
  %1523 = vmatpush.msra.mxu0 0.0
  %1524 = vmatpush.msra.mxu0 0.0
  %1525 = vmatpush.msra.mxu0 %v1506
  %1526 = vmatpush.msra.mxu0 %v1505
  %1527 = vmatpush.msra.mxu0 %v1504
  %1528 = vmatpush.msra.mxu0 %v1503
  %1529 = vmatmul.f32.gmra.mxu0 %v1508
  %v1530 = vpop.f32.mrf.mxu0
  %v1531 = vadd.f32 0.0, %v1530
  %1532 = vmatmul.f32.gmra.mxu0 %v1511
  %v1533 = vpop.f32.mrf.mxu0
  %v1534 = vadd.f32 0.0, %v1533
  %1535 = vdwg.mxu0
  %v1536 = vadd.f32 %v981, %v1531
  %v1537 = vadd.f32 %v982, %v1534
  %v1538 = vperm.slane %v984, 3
  %v1539 = vadd.f32 %v1536, %v1538
  %v1540 = vadd.f32 %v1537, %v1538
  %v1541 = vsel %vm269, %v1539, 0.0
  %1542 = vadd.xlane.f32.xlu0 %v1541
  %v1543 = vpop.xlane.xlu0 %1542
  %v1544 = vsel %vm273, %v1540, 0.0
  %1545 = vadd.xlane.f32.xlu0 %v1544
  %v1546 = vpop.xlane.xlu0 %1545
  %v1547 = vmul.f32 %v1543, %v283
  %v1548 = vmul.f32 %v1546, %v283
  %v1549 = vsub.f32 %v1539, %v1547
  %v1550 = vsub.f32 %v1540, %v1548
  %v1551 = vmul.f32 %v1549, %v1549
  %v1552 = vmul.f32 %v1550, %v1550
  %v1553 = vsel %vm269, %v1551, 0.0
  %1554 = vadd.xlane.f32.xlu0 %v1553
  %v1555 = vpop.xlane.xlu0 %1554
  %v1556 = vsel %vm273, %v1552, 0.0
  %1557 = vadd.xlane.f32.xlu0 %v1556
  %v1558 = vpop.xlane.xlu0 %1557
  %v1559 = vmul.f32 %v1555, %v283
  %v1560 = vmul.f32 %v1558, %v283
  %v1561 = vadd.f32 %v1559, 1e-06
  %v1562 = vadd.f32 %v1560, 1e-06
  %v1563 = vrsqrt.pop %v1561
  %v1564 = vmul.f32 %v1563, %v1561
  %v1565 = vmul.f32 %v1564, %v1563
  %v1566 = vmul.f32 0.5, %v1565
  %v1567 = vsub.f32 1.5, %v1566
  %v1568 = vmul.f32 %v1563, %v1567
  %vm1569 = vweird.f32 %v1561
  %vm1570 = vweird.f32 %v1563
  %vm1571 = vmor %vm1569, %vm1570
  %v1572 = vsel %vm1571, %v1563, %v1568
  %v1573 = vrsqrt.pop %v1562
  %v1574 = vmul.f32 %v1573, %v1562
  %v1575 = vmul.f32 %v1574, %v1573
  %v1576 = vmul.f32 0.5, %v1575
  %v1577 = vsub.f32 1.5, %v1576
  %v1578 = vmul.f32 %v1573, %v1577
  %vm1579 = vweird.f32 %v1562
  %vm1580 = vweird.f32 %v1573
  %vm1581 = vmor %vm1579, %vm1580
  %v1582 = vsel %vm1581, %v1573, %v1578
  %v1583 = vmul.f32 %v1549, %v1572
  %v1584 = vmul.f32 %v1550, %v1582
  %v1585 = vperm.slane %v984, 4
  %v1586 = vmul.f32 %v1583, %v1585
  %v1587 = vmul.f32 %v1584, %v1585
  %v1588 = vperm.slane %v984, 5
  %v1589 = vadd.f32 %v1586, %v1588
  %v1590 = vadd.f32 %v1587, %v1588
  %s1591 = scalar_lea.vmem %s5, 32
  %v1592 = vld [vmem:[%s1591] sm:$0xff]
  %v1593 = vld [vmem:[%s1591 + $0x8] sm:$0xff]
  %v1594 = vld [vmem:[%s1591 + $0x10] sm:$0xff]
  %v1595 = vld [vmem:[%s1591 + $0x18] sm:$0xff]
  %v1596 = vperm.slane %v984, 6
  %v1598 = vsel %vm269, %v1589, 0
  %v1601 = vsel %vm269, %v1590, 0
  %1603 = vmatpush.msra.mxu0 0.0
  %1604 = vmatpush.msra.mxu0 0.0
  %1605 = vmatpush.msra.mxu0 0.0
  %1606 = vmatpush.msra.mxu0 0.0
  %1607 = vmatpush.msra.mxu0 0.0
  %1608 = vmatpush.msra.mxu0 0.0
  %1609 = vmatpush.msra.mxu0 0.0
  %1610 = vmatpush.msra.mxu0 0.0
  %1611 = vmatpush.msra.mxu0 0.0
  %1612 = vmatpush.msra.mxu0 0.0
  %1613 = vmatpush.msra.mxu0 0.0
  %1614 = vmatpush.msra.mxu0 0.0
  %1615 = vmatpush.msra.mxu0 %v1595
  %1616 = vmatpush.msra.mxu0 %v1594
  %1617 = vmatpush.msra.mxu0 %v1593
  %1618 = vmatpush.msra.mxu0 %v1592
  %1619 = vmatmul.f32.gmra.mxu0 %v1598
  %v1620 = vpop.f32.mrf.mxu0
  %v1621 = vadd.f32 %v1596, %v1620
  %1622 = vmatmul.f32.gmra.mxu0 %v1601
  %v1623 = vpop.f32.mrf.mxu0
  %v1624 = vadd.f32 %v1596, %v1623
  %1625 = vdwg.mxu0
  %v1626 = vmul.f32 %v1621, 0.5
  %v1627 = vmul.f32 %v1624, 0.5
  %v1628 = vmul.f32 %v1621, 0.044715
  %v1629 = vmul.f32 %v1624, 0.044715
  %v1630 = vmul.f32 %v1628, %v1621
  %v1631 = vmul.f32 %v1629, %v1624
  %v1632 = vmul.f32 %v1630, %v1621
  %v1633 = vmul.f32 %v1631, %v1624
  %v1634 = vadd.f32 %v1621, %v1632
  %v1635 = vadd.f32 %v1624, %v1633
  %v1636 = vmul.f32 %v1634, 0.7978846
  %v1637 = vmul.f32 %v1635, 0.7978846
  %v1638 = vtanh.pop %v1636
  %v1639 = vtanh.pop %v1637
  %v1640 = vadd.f32 %v1638, 1.0
  %v1641 = vadd.f32 %v1639, 1.0
  %v1642 = vmul.f32 %v1626, %v1640
  %v1643 = vmul.f32 %v1627, %v1641
  %s1644 = scalar_lea.vmem %s6, 128
  %v1645 = vld [vmem:[%s1644] sm:$0xff]
  %v1646 = vld [vmem:[%s1644 + $0x8] sm:$0xff]
  %v1647 = vld [vmem:[%s1644 + $0x10] sm:$0xff]
  %v1648 = vld [vmem:[%s1644 + $0x18] sm:$0xff]
  %v1649 = vld [vmem:[%s1644 + $0x20] sm:$0xff]
  %v1650 = vld [vmem:[%s1644 + $0x28] sm:$0xff]
  %v1651 = vld [vmem:[%s1644 + $0x30] sm:$0xff]
  %v1652 = vld [vmem:[%s1644 + $0x38] sm:$0xff]
  %v1653 = vld [vmem:[%s1644 + $0x40] sm:$0xff]
  %v1654 = vld [vmem:[%s1644 + $0x48] sm:$0xff]
  %v1655 = vld [vmem:[%s1644 + $0x50] sm:$0xff]
  %v1656 = vld [vmem:[%s1644 + $0x58] sm:$0xff]
  %v1657 = vld [vmem:[%s1644 + $0x60] sm:$0xff]
  %v1658 = vld [vmem:[%s1644 + $0x68] sm:$0xff]
  %v1659 = vld [vmem:[%s1644 + $0x70] sm:$0xff]
  %v1660 = vld [vmem:[%s1644 + $0x78] sm:$0xff]
  %1661 = vmatpush.msra.mxu0 %v1660
  %1662 = vmatpush.msra.mxu0 %v1659
  %1663 = vmatpush.msra.mxu0 %v1658
  %1664 = vmatpush.msra.mxu0 %v1657
  %1665 = vmatpush.msra.mxu0 %v1656
  %1666 = vmatpush.msra.mxu0 %v1655
  %1667 = vmatpush.msra.mxu0 %v1654
  %1668 = vmatpush.msra.mxu0 %v1653
  %1669 = vmatpush.msra.mxu0 %v1652
  %1670 = vmatpush.msra.mxu0 %v1651
  %1671 = vmatpush.msra.mxu0 %v1650
  %1672 = vmatpush.msra.mxu0 %v1649
  %1673 = vmatpush.msra.mxu0 %v1648
  %1674 = vmatpush.msra.mxu0 %v1647
  %1675 = vmatpush.msra.mxu0 %v1646
  %1676 = vmatpush.msra.mxu0 %v1645
  %1677 = vmatmul.f32.gmra.mxu0 %v1642
  %v1678 = vpop.f32.mrf.mxu0
  %v1679 = vadd.f32 0.0, %v1678
  %1680 = vmatmul.f32.gmra.mxu0 %v1643
  %v1681 = vpop.f32.mrf.mxu0
  %1682 = vdwg.mxu0
  %v1683 = vadd.f32 %v1539, %v1679
  %v1684 = vperm.slane %v984, 7
  %v1685 = vadd.f32 %v1683, %v1684
  %v1686 = vsel %vm269, %v1685, 0.0
  %1687 = vadd.xlane.f32.xlu0 %v1686
  %v1688 = vpop.xlane.xlu0 %1687
  %v1689 = vmul.f32 %v1688, %v283
  %v1690 = vsub.f32 %v1685, %v1689
  %v1691 = vmul.f32 %v1690, %v1690
  %v1692 = vsel %vm269, %v1691, 0.0
  %1693 = vadd.xlane.f32.xlu0 %v1692
  %v1694 = vpop.xlane.xlu0 %1693
  %v1695 = vmul.f32 %v1694, %v283
  %v1696 = vadd.f32 %v1695, 1e-06
  %v1697 = vrsqrt.pop %v1696
  %v1698 = vmul.f32 %v1697, %v1696
  %v1699 = vmul.f32 %v1698, %v1697
  %v1700 = vmul.f32 0.5, %v1699
  %v1701 = vsub.f32 1.5, %v1700
  %v1702 = vmul.f32 %v1697, %v1701
  %vm1703 = vweird.f32 %v1696
  %vm1704 = vweird.f32 %v1697
  %vm1705 = vmor %vm1703, %vm1704
  %v1706 = vsel %vm1705, %v1697, %v1702
  %v1707 = vmul.f32 %v1690, %v1706
  %v1708 = vperm.slane %v34, 0
  %v1709 = vmul.f32 %v1707, %v1708
  %v1710 = vperm.slane %v35, 0
  %v1711 = vadd.f32 %v1709, %v1710
  %v1712 = vld [vmem:[%s8] sm:$0xff]
  %v1713 = vld [vmem:[%s8 + $0x8] sm:$0xff]
  %v1714 = vld [vmem:[%s8 + $0x10] sm:$0xff]
  %v1715 = vld [vmem:[%s8 + $0x18] sm:$0xff]
  %v1716 = vperm.slane %v36, 0
  %v1718 = vsel %vm269, %v1711, 0
  %1720 = vmatpush.msra.mxu0 0.0
  %1721 = vmatpush.msra.mxu0 0.0
  %1722 = vmatpush.msra.mxu0 0.0
  %1723 = vmatpush.msra.mxu0 0.0
  %1724 = vmatpush.msra.mxu0 0.0
  %1725 = vmatpush.msra.mxu0 0.0
  %1726 = vmatpush.msra.mxu0 0.0
  %1727 = vmatpush.msra.mxu0 0.0
  %1728 = vmatpush.msra.mxu0 0.0
  %1729 = vmatpush.msra.mxu0 0.0
  %1730 = vmatpush.msra.mxu0 0.0
  %1731 = vmatpush.msra.mxu0 0.0
  %1732 = vmatpush.msra.mxu0 %v1715
  %1733 = vmatpush.msra.mxu0 %v1714
  %1734 = vmatpush.msra.mxu0 %v1713
  %1735 = vmatpush.msra.mxu0 %v1712
  %1736 = vmatmul.f32.gmra.mxu0 %v1718
  %v1737 = vpop.f32.mrf.mxu0
  %v1738 = vadd.f32 %v1716, %v1737
  %1739 = vdwg.mxu0
  %1740 = vst [vmem:[%s9] sm:$0x3] %v1738
  // Predicated region
  $region38: #{_lambda_.1} parent=0 // pred_check
    _
  $region39: #{_lambda_.1} parent=0 // pred_check_branch
    %1742 = sbr.rel (0) target = $region41
  $region40: #{_lambda_.1} parent=0 // pred_region
    _
  $region41: #{_lambda_.1} parent=0 // pred_fallthru
    _
  // Predicated region
  $region42: #{_lambda_.1} parent=0 // pred_check
    _
  $region43: #{_lambda_.1} parent=0 // pred_check_branch
    %1744 = sbr.rel (0) target = $region45
  $region44: #{_lambda_.1} parent=0 // pred_region
    _
  $region45: #{_lambda_.1} parent=0 // pred_fallthru
    _

</llo_original>
